<compile_context>
chip_gen: v6e
topology: v6e:2x2x1
jax: 0.10.0
libtpu: 0.0.40
codegen_flags: <defaults>
</compile_context>

<pallas_src>
import functools

import jax
import jax.numpy as jnp
from jax import lax
from jax.experimental import pallas as pl
from jax.experimental.pallas import tpu as pltpu


# ----------------------------- Pallas kernel --------------------------------
def _attention_kernel(x_ref, wqkv_ref, bqkv_ref, wp_ref, bp_ref, o_ref, oh_ref,
                      *, num_heads, key_dim, d, bt, hw):
    """Block of `bt` batch elements per grid step.

    x_ref    : (bt, hw, C)          bf16 pixels, channels last
    wqkv_ref : (C, nh*(2*kd + d))   bf16, columns = [Q heads | K heads | V heads],
                                    softmax scale pre-folded into the Q slice
    bqkv_ref : (1, nh*(2*kd + d))   f32, K-bias slots zeroed (softmax-invariant)
    wp_ref   : (nh*d, dim_pad)      bf16 folded proj ConvBN, zero-padded columns
    bp_ref   : (1, dim_pad)         f32
    o_ref    : (bt, hw, dim_pad)    bf16 (lane-dense store)
    oh_ref   : (bt*hw, nh*d)        bf16 VMEM scratch, per-head outputs head-major
    """
    c = x_ref.shape[-1]
    rows = bt * hw
    nh_kd = num_heads * key_dim

    # Fused Q/K/V projection for all heads and all bt*hw rows: one MXU push.
    x2 = x_ref[...].reshape(rows, c)                                    # bf16
    qkv = jnp.dot(x2, wqkv_ref[...],
                  preferred_element_type=jnp.float32) + bqkv_ref[...]   # (rows, tot) f32

    # Per (batch-element, head) attention on static lane slices of the fused
    # result (cheap XLU work, off the MXU critical path).
    for b in range(bt):                                   # static unroll (bt small)
        r0 = b * hw
        for h in range(num_heads):                        # static unroll (nh small)
            q = qkv[r0:r0 + hw, h * key_dim:(h + 1) * key_dim]
            k = qkv[r0:r0 + hw, nh_kd + h * key_dim:nh_kd + (h + 1) * key_dim]
            v = qkv[r0:r0 + hw, 2 * nh_kd + h * d:2 * nh_kd + (h + 1) * d]

            # scores: contract last dims directly (no explicit k.T relayout).
            # torch's "/ self.scale" is pre-folded into the Q weight/bias.
            s = lax.dot_general(q, k, (((1,), (1,)), ((), ())),
                                preferred_element_type=jnp.float32)     # (hw, hw)

            # numerically stable softmax in f32; denominator on the EUP.
            s = s - jnp.max(s, axis=-1, keepdims=True)
            p = jnp.exp(s)
            p = p * pl.reciprocal(jnp.sum(p, axis=-1, keepdims=True), approx=True)

            o_h = jnp.dot(p, v, preferred_element_type=jnp.float32)     # (hw, d)
            # Write at static lane offset (head-major channel order, matching
            # the module's permute+reshape) -- no concatenate on the hot path.
            oh_ref[r0:r0 + hw, h * d:(h + 1) * d] = o_h.astype(oh_ref.dtype)

    # Single fused output projection (depth nh*d) over all rows; the padded
    # output slab keeps the store lane-dense/unmasked.
    out = jnp.dot(oh_ref[...], wp_ref[...],
                  preferred_element_type=jnp.float32) + bp_ref[...]
    o_ref[...] = out.reshape(bt, hw, -1).astype(o_ref.dtype)


# ----------------------------- Wrapper ---------------------------------------
def _pick_batch_block(B, HW, target_rows=256):
    """Largest divisor bt of B with bt*HW <= target_rows that still leaves
    >=2 grid blocks (so v7x's two TensorCores both get work when B allows)."""
    best = 1
    for bt in range(1, B + 1):
        if B % bt:
            continue
        if bt * HW > max(HW, target_rows):
            continue
        if B >= 2 and B // bt < 2:
            continue
        best = max(best, bt)
    return best


def attention_pallas(x_nchw, params, *, num_heads, key_dim, attn_ratio):
    """x_nchw: [B, C, H, W] float32 -> [B, C, H, W] float32."""
    B, C, H, W = x_nchw.shape
    HW = H * W
    d = int(attn_ratio * key_dim)
    dh = num_heads * d
    nh_kd = num_heads * key_dim
    dim = C
    # torch: attn = matmul(qq, kk) / self.scale, scale = key_dim ** -0.5
    inv_scale = float(key_dim) ** 0.5
    dim_pad = ((dim + 127) // 128) * 128            # lane-dense output stores

    wq, bq, wk, bk, wv, bv, wp, bp = params

    # Fused QKV weights: [Q (scale folded) | K | V] in bf16 for the MXU.
    # K bias is dropped (exactly cancels in softmax over the key axis).
    w_qkv = jnp.concatenate([wq * inv_scale, wk, wv], axis=1).astype(jnp.bfloat16)
    b_qkv = jnp.concatenate(
        [(bq * inv_scale).astype(jnp.float32),
         jnp.zeros((nh_kd,), jnp.float32),
         bv.astype(jnp.float32)], axis=0).reshape(1, -1)

    wp_p = jnp.zeros((dh, dim_pad), jnp.bfloat16).at[:, :dim].set(
        wp.astype(jnp.bfloat16))
    bp_p = jnp.zeros((1, dim_pad), jnp.float32).at[:, :dim].set(
        bp.reshape(1, dim).astype(jnp.float32))

    # NCHW -> (B, HW, C), bf16 MXU operand.
    x = jnp.transpose(x_nchw.reshape(B, C, HW), (0, 2, 1)).astype(jnp.bfloat16)

    bt = _pick_batch_block(B, HW)
    grid = (B // bt,)

    kernel = functools.partial(_attention_kernel, num_heads=num_heads,
                               key_dim=key_dim, d=d, bt=bt, hw=HW)

    def bcast(shape):
        return pl.BlockSpec(shape, lambda b, _n=len(shape): (0,) * _n)

    out = pl.pallas_call(
        kernel,
        out_shape=jax.ShapeDtypeStruct((B, HW, dim_pad), jnp.bfloat16),
        grid_spec=pltpu.PrefetchScalarGridSpec(
            num_scalar_prefetch=0,
            grid=grid,
            in_specs=[
                pl.BlockSpec((bt, HW, C), lambda b: (b, 0, 0)),       # x block
                bcast(w_qkv.shape), bcast(b_qkv.shape),               # fused QKV
                bcast(wp_p.shape), bcast(bp_p.shape),                 # proj
            ],
            out_specs=pl.BlockSpec((bt, HW, dim_pad), lambda b: (b, 0, 0)),
            scratch_shapes=[pltpu.VMEM((bt * HW, dh), jnp.bfloat16)],
        ),
        compiler_params=pltpu.CompilerParams(
            dimension_semantics=("parallel",)),
    )(x, w_qkv, b_qkv, wp_p, bp_p)

    # (B, HW, dim_pad) bf16 -> (B, dim, H, W) f32
    out = out[:, :, :dim].astype(jnp.float32)
    return jnp.transpose(out, (0, 2, 1)).reshape(B, dim, H, W)


# ----------------------- Parameter construction ------------------------------
def _fold_convbn(key, in_ch, out_ch, eps=1e-5):
    """Deterministic 1x1 Conv (no bias) + eval-mode BatchNorm2d, folded.

    Returns W_eff of shape (in_ch, out_ch) (channels-last matmul convention)
    and b_eff of shape (out_ch,).
    """
    k_w, k_g, k_b, k_m, k_v = jax.random.split(key, 5)
    w = 0.02 * jax.random.normal(k_w, (out_ch, in_ch), jnp.float32)   # conv weight
    gamma = 1.0 + 0.1 * jax.random.normal(k_g, (out_ch,), jnp.float32)
    beta = 0.05 * jax.random.normal(k_b, (out_ch,), jnp.float32)
    mean = 0.1 * jax.random.normal(k_m, (out_ch,), jnp.float32)
    var = jax.random.uniform(k_v, (out_ch,), jnp.float32, 0.5, 1.5)
    s = gamma / jnp.sqrt(var + eps)
    w_eff = (w * s[:, None]).T            # (in_ch, out_ch)
    b_eff = beta - mean * s               # (out_ch,)
    return w_eff, b_eff


def make_params(key, dim, key_dim, num_heads, attn_ratio):
    nh_kd = key_dim * num_heads
    d = int(attn_ratio * key_dim)
    dh = d * num_heads
    kq, kk, kv, kp = jax.random.split(key, 4)
    wq, bq = _fold_convbn(kq, dim, nh_kd)
    wk, bk = _fold_convbn(kk, dim, nh_kd)
    wv, bv = _fold_convbn(kv, dim, dh)
    wp, bp = _fold_convbn(kp, dh, dim)
    return (wq, bq, wk, bk, wv, bv, wp, bp)


# ----------------------- Pure-JAX reference (for checking) -------------------
def attention_ref(x_nchw, params, *, num_heads, key_dim, attn_ratio):
    B, C, H, W = x_nchw.shape
    HW = H * W
    d = int(attn_ratio * key_dim)
    dh = d * num_heads
    scale = key_dim ** (-0.5)
    wq, bq, wk, bk, wv, bv, wp, bp = params

    xf = jnp.transpose(x_nchw.reshape(B, C, HW), (0, 2, 1))           # (B,HW,C)
    q = (xf @ wq + bq).reshape(B, HW, num_heads, key_dim).transpose(0, 2, 1, 3)
    k = (xf @ wk + bk).reshape(B, HW, num_heads, key_dim).transpose(0, 2, 1, 3)
    v = (xf @ wv + bv).reshape(B, HW, num_heads, d).transpose(0, 2, 1, 3)
    attn = jnp.einsum("bhqc,bhkc->bhqk", q, k) / scale
    attn = jax.nn.softmax(attn, axis=-1)
    o = jnp.einsum("bhqk,bhkd->bhqd", attn, v)                        # (B,nh,HW,d)
    o = o.transpose(0, 2, 1, 3).reshape(B, HW, dh)                    # head-major ch
    out = o @ wp + bp                                                 # (B,HW,dim)
    return jnp.transpose(out, (0, 2, 1)).reshape(B, C, H, W)


# ----------------------------------- Main -------------------------------------
if __name__ == "__main__":
    # Small shapes consistent with the module's forward.
    B, dim, H, W = 2, 32, 8, 8
    key_dim, num_heads, attn_ratio = 16, 2, 4

    root = jax.random.PRNGKey(0)
    kx, kp = jax.random.split(root)
    x = jax.random.normal(kx, (B, dim, H, W), jnp.float32)
    params = make_params(kp, dim, key_dim, num_heads, attn_ratio)

    out = attention_pallas(x, params, num_heads=num_heads,
                           key_dim=key_dim, attn_ratio=attn_ratio)
    out = jax.block_until_ready(out)

    ref = attention_ref(x, params, num_heads=num_heads,
                        key_dim=key_dim, attn_ratio=attn_ratio)
    assert out.shape == (B, dim, H, W)
    # bf16 MXU operands + bf16 output store (f32 accumulation / softmax) ->
    # loosened tolerance vs the f32 reference.
    assert jnp.allclose(out, ref, atol=3e-2, rtol=3e-2), "mismatch vs reference"

    print("KERNEL_OK")
</pallas_src>

<mosaic_0001>
module attributes {stable_mosaic.version = 11 : i64} {
  func.func @_attention_kernel(%arg0: i32, %arg1: memref<1x64x32xbf16, #tpu.memory_space<vmem>>, %arg2: memref<32x192xbf16, #tpu.memory_space<vmem>>, %arg3: memref<1x192xf32, #tpu.memory_space<vmem>>, %arg4: memref<128x128xbf16, #tpu.memory_space<vmem>>, %arg5: memref<1x128xf32, #tpu.memory_space<vmem>>, %arg6: memref<1x64x128xbf16, #tpu.memory_space<vmem>>, %arg7: memref<64x128xbf16, #tpu.memory_space<vmem>>) attributes {dimension_semantics = [#tpu.dimension_semantics<parallel>], iteration_bounds = array<i64: 2>, scalar_prefetch = 0 : i64, scratch_operands = 1 : i64, tpu.core_type = #tpu.core_type<tc>, window_params = [{transform_indices = @transform_0, window_bounds = array<i64: 1, 64, 32>}, {pipeline_mode = #tpu.pipeline_mode<synchronous>, transform_indices = @transform_1, window_bounds = array<i64: 32, 192>}, {pipeline_mode = #tpu.pipeline_mode<synchronous>, transform_indices = @transform_2, window_bounds = array<i64: 1, 192>}, {pipeline_mode = #tpu.pipeline_mode<synchronous>, transform_indices = @transform_3, window_bounds = array<i64: 128, 128>}, {pipeline_mode = #tpu.pipeline_mode<synchronous>, transform_indices = @transform_4, window_bounds = array<i64: 1, 128>}, {transform_indices = @transform_5, window_bounds = array<i64: 1, 64, 128>}]} {
    %c0 = arith.constant 0 : index
    %c0_0 = arith.constant 0 : index
    %c0_1 = arith.constant 0 : index
    %0 = vector.load %arg1[%c0, %c0_0, %c0_1] : memref<1x64x32xbf16, #tpu.memory_space<vmem>>, vector<1x64x32xbf16>
    %1 = vector.shape_cast %0 : vector<1x64x32xbf16> to vector<64x32xbf16>
    %c0_2 = arith.constant 0 : index
    %c0_3 = arith.constant 0 : index
    %2 = vector.load %arg2[%c0_2, %c0_3] : memref<32x192xbf16, #tpu.memory_space<vmem>>, vector<32x192xbf16>
    %cst = arith.constant dense<0.000000e+00> : vector<64x192xf32>
    %3 = tpu.matmul %1, %2, %cst {dimension_numbers = #tpu.dot_dimension_numbers<[1], [0], [0], [1], [0, 0, 1, 1], [], []>} : vector<64x32xbf16>, vector<32x192xbf16>, vector<64x192xf32> -> vector<64x192xf32>
    %c0_4 = arith.constant 0 : index
    %c0_5 = arith.constant 0 : index
    %4 = vector.load %arg3[%c0_4, %c0_5] : memref<1x192xf32, #tpu.memory_space<vmem>>, vector<1x192xf32>
    %5 = vector.broadcast %4 : vector<1x192xf32> to vector<64x192xf32>
    %6 = arith.addf %3, %5 : vector<64x192xf32>
    %7 = vector.extract_strided_slice %6 {offsets = [0, 0], sizes = [64, 16], strides = [1, 1]} : vector<64x192xf32> to vector<64x16xf32>
    %8 = vector.extract_strided_slice %6 {offsets = [0, 32], sizes = [64, 16], strides = [1, 1]} : vector<64x192xf32> to vector<64x16xf32>
    %9 = vector.extract_strided_slice %6 {offsets = [0, 64], sizes = [64, 64], strides = [1, 1]} : vector<64x192xf32> to vector<64x64xf32>
    %cst_6 = arith.constant dense<0.000000e+00> : vector<64x64xf32>
    %10 = tpu.matmul %7, %8, %cst_6 {dimension_numbers = #tpu.dot_dimension_numbers<[1], [1], [0], [0], [0, 0, 1, 0], [], []>} : vector<64x16xf32>, vector<64x16xf32>, vector<64x64xf32> -> vector<64x64xf32>
    %cst_7 = arith.constant dense<0xFF800000> : vector<64xf32>
    %11 = vector.multi_reduction <maximumf>, %10, %cst_7 [1] : vector<64x64xf32> to vector<64xf32>
    %12 = vector.shape_cast %11 : vector<64xf32> to vector<64x1xf32>
    %13 = vector.broadcast %12 : vector<64x1xf32> to vector<64x64xf32>
    %14 = arith.subf %10, %13 : vector<64x64xf32>
    %15 = math.exp %14 : vector<64x64xf32>
    %cst_8 = arith.constant dense<0.000000e+00> : vector<64xf32>
    %16 = vector.multi_reduction <add>, %15, %cst_8 [1] : vector<64x64xf32> to vector<64xf32>
    %17 = vector.shape_cast %16 : vector<64xf32> to vector<64x1xf32>
    %18 = tpu.reciprocal %17 {approx = true} : vector<64x1xf32> -> vector<64x1xf32>
    %19 = vector.broadcast %18 : vector<64x1xf32> to vector<64x64xf32>
    %20 = arith.mulf %15, %19 : vector<64x64xf32>
    %cst_9 = arith.constant dense<0.000000e+00> : vector<64x64xf32>
    %21 = tpu.matmul %20, %9, %cst_9 {dimension_numbers = #tpu.dot_dimension_numbers<[1], [0], [0], [1], [0, 0, 1, 1], [], []>} : vector<64x64xf32>, vector<64x64xf32>, vector<64x64xf32> -> vector<64x64xf32>
    %22 = arith.truncf %21 : vector<64x64xf32> to vector<64x64xbf16>
    %c0_10 = arith.constant 0 : index
    %c0_11 = arith.constant 0 : index
    %23 = vector.load %arg7[%c0_10, %c0_11] : memref<64x128xbf16, #tpu.memory_space<vmem>>, vector<64x64xbf16>
    tpu.vector_store %arg7[%c0_10, %c0_11], %22 {strides = array<i32>} : memref<64x128xbf16, #tpu.memory_space<vmem>>, vector<64x64xbf16>,
    %24 = vector.extract_strided_slice %6 {offsets = [0, 16], sizes = [64, 16], strides = [1, 1]} : vector<64x192xf32> to vector<64x16xf32>
    %25 = vector.extract_strided_slice %6 {offsets = [0, 48], sizes = [64, 16], strides = [1, 1]} : vector<64x192xf32> to vector<64x16xf32>
    %26 = vector.extract_strided_slice %6 {offsets = [0, 128], sizes = [64, 64], strides = [1, 1]} : vector<64x192xf32> to vector<64x64xf32>
    %cst_12 = arith.constant dense<0.000000e+00> : vector<64x64xf32>
    %27 = tpu.matmul %24, %25, %cst_12 {dimension_numbers = #tpu.dot_dimension_numbers<[1], [1], [0], [0], [0, 0, 1, 0], [], []>} : vector<64x16xf32>, vector<64x16xf32>, vector<64x64xf32> -> vector<64x64xf32>
    %cst_13 = arith.constant dense<0xFF800000> : vector<64xf32>
    %28 = vector.multi_reduction <maximumf>, %27, %cst_13 [1] : vector<64x64xf32> to vector<64xf32>
    %29 = vector.shape_cast %28 : vector<64xf32> to vector<64x1xf32>
    %30 = vector.broadcast %29 : vector<64x1xf32> to vector<64x64xf32>
    %31 = arith.subf %27, %30 : vector<64x64xf32>
    %32 = math.exp %31 : vector<64x64xf32>
    %cst_14 = arith.constant dense<0.000000e+00> : vector<64xf32>
    %33 = vector.multi_reduction <add>, %32, %cst_14 [1] : vector<64x64xf32> to vector<64xf32>
    %34 = vector.shape_cast %33 : vector<64xf32> to vector<64x1xf32>
    %35 = tpu.reciprocal %34 {approx = true} : vector<64x1xf32> -> vector<64x1xf32>
    %36 = vector.broadcast %35 : vector<64x1xf32> to vector<64x64xf32>
    %37 = arith.mulf %32, %36 : vector<64x64xf32>
    %cst_15 = arith.constant dense<0.000000e+00> : vector<64x64xf32>
    %38 = tpu.matmul %37, %26, %cst_15 {dimension_numbers = #tpu.dot_dimension_numbers<[1], [0], [0], [1], [0, 0, 1, 1], [], []>} : vector<64x64xf32>, vector<64x64xf32>, vector<64x64xf32> -> vector<64x64xf32>
    %39 = arith.truncf %38 : vector<64x64xf32> to vector<64x64xbf16>
    %c0_16 = arith.constant 0 : index
    %c64 = arith.constant 64 : index
    %40 = vector.load %arg7[%c0_16, %c64] : memref<64x128xbf16, #tpu.memory_space<vmem>>, vector<64x64xbf16>
    tpu.vector_store %arg7[%c0_16, %c64], %39 {strides = array<i32>} : memref<64x128xbf16, #tpu.memory_space<vmem>>, vector<64x64xbf16>,
    %c0_17 = arith.constant 0 : index
    %c0_18 = arith.constant 0 : index
    %41 = vector.load %arg7[%c0_17, %c0_18] : memref<64x128xbf16, #tpu.memory_space<vmem>>, vector<64x128xbf16>
    %c0_19 = arith.constant 0 : index
    %c0_20 = arith.constant 0 : index
    %42 = vector.load %arg4[%c0_19, %c0_20] : memref<128x128xbf16, #tpu.memory_space<vmem>>, vector<128x128xbf16>
    %cst_21 = arith.constant dense<0.000000e+00> : vector<64x128xf32>
    %43 = tpu.matmul %41, %42, %cst_21 {dimension_numbers = #tpu.dot_dimension_numbers<[1], [0], [0], [1], [0, 0, 1, 1], [], []>} : vector<64x128xbf16>, vector<128x128xbf16>, vector<64x128xf32> -> vector<64x128xf32>
    %c0_22 = arith.constant 0 : index
    %c0_23 = arith.constant 0 : index
    %44 = vector.load %arg5[%c0_22, %c0_23] : memref<1x128xf32, #tpu.memory_space<vmem>>, vector<1x128xf32>
    %45 = vector.broadcast %44 : vector<1x128xf32> to vector<64x128xf32>
    %46 = arith.addf %43, %45 : vector<64x128xf32>
    %47 = vector.shape_cast %46 : vector<64x128xf32> to vector<1x64x128xf32>
    %48 = arith.truncf %47 : vector<1x64x128xf32> to vector<1x64x128xbf16>
    %c0_24 = arith.constant 0 : index
    %c0_25 = arith.constant 0 : index
    %c0_26 = arith.constant 0 : index
    %49 = vector.load %arg6[%c0_24, %c0_25, %c0_26] : memref<1x64x128xbf16, #tpu.memory_space<vmem>>, vector<1x64x128xbf16>
    tpu.vector_store %arg6[%c0_24, %c0_25, %c0_26], %48 {strides = array<i32>} : memref<1x64x128xbf16, #tpu.memory_space<vmem>>, vector<1x64x128xbf16>,
    return
  }
  func.func @transform_0(%arg0: i32) -> (i32, i32, i32) {
    %c0_i32 = arith.constant 0 : i32
    %c0_i32_0 = arith.constant 0 : i32
    %c0_i32_1 = arith.constant 0 : i32
    return %arg0, %c0_i32, %c0_i32_0 : i32, i32, i32
  }
  func.func @transform_1(%arg0: i32) -> (i32, i32) {
    %c0_i32 = arith.constant 0 : i32
    %c0_i32_0 = arith.constant 0 : i32
    %c0_i32_1 = arith.constant 0 : i32
    return %c0_i32, %c0_i32_0 : i32, i32
  }
  func.func @transform_2(%arg0: i32) -> (i32, i32) {
    %c0_i32 = arith.constant 0 : i32
    %c0_i32_0 = arith.constant 0 : i32
    %c0_i32_1 = arith.constant 0 : i32
    return %c0_i32, %c0_i32_0 : i32, i32
  }
  func.func @transform_3(%arg0: i32) -> (i32, i32) {
    %c0_i32 = arith.constant 0 : i32
    %c0_i32_0 = arith.constant 0 : i32
    %c0_i32_1 = arith.constant 0 : i32
    return %c0_i32, %c0_i32_0 : i32, i32
  }
  func.func @transform_4(%arg0: i32) -> (i32, i32) {
    %c0_i32 = arith.constant 0 : i32
    %c0_i32_0 = arith.constant 0 : i32
    %c0_i32_1 = arith.constant 0 : i32
    return %c0_i32, %c0_i32_0 : i32, i32
  }
  func.func @transform_5(%arg0: i32) -> (i32, i32, i32) {
    %c0_i32 = arith.constant 0 : i32
    %c0_i32_0 = arith.constant 0 : i32
    %c0_i32_1 = arith.constant 0 : i32
    return %arg0, %c0_i32, %c0_i32_0 : i32, i32, i32
  }
}

</mosaic_0001>

<llo_original>
// kernel: tpu_custom_call.1
$region0: #{tpu_custom_call.1}
  #allocation0 [shape = 'u32[]', space=smem, size = 0x4, offset = 0x4, fixed_abs, tag = 'smem constant byte address 0x4 - core index']
  #allocation1 [shape = 'u32[144,128]{1,0:T(1,128)}', space=vmem, size = 0x12000, scoped, tag = 'internal scratch']
  #allocation2 [shape = 'bf16[64,128]{1,0:T(8,128)(2,1)}', space=vmem, size = 0x4000, scoped, tag = 'scratch operand']
  %s0 = inlined_call_operand.vmem [shape: bf16[2,64,32], index: 0, kind: input, shape index: {}]
  %s1 = inlined_call_operand.vmem [shape: bf16[32,192], index: 1, kind: input, shape index: {}]
  %s2 = inlined_call_operand.vmem [shape: f32[1,192], index: 2, kind: input, shape index: {}]
  %s3 = inlined_call_operand.vmem [shape: bf16[128,128], index: 3, kind: input, shape index: {}]
  %s4 = inlined_call_operand.vmem [shape: f32[1,128], index: 4, kind: input, shape index: {}]
  %s5 = inlined_call_operand.hbm [shape: bf16[2,64,128], index: 5, kind: output, shape index: {}]
  %s6 = sld [smem:[#allocation0]]
  $region53: #{tpu_custom_call.1} parent=0
    _
  %s8 = ssub.s32 1, %s6
  %s9 = scalar_select 0, %s8, %s6
  $region1: #{tpu_custom_call.1} parent=0
    #allocation3 [shape = 'u8[32768]{0}', space=vmem, size = 0x8000, scoped, tag = 'output window, operand 0']
    #allocation4 [shape = 's32[2]{0}', space=sflag, size = 0x8, scoped, tag = 'scoped memory for tpu_custom_call.1']
    %10 = vsyncpa [#allocation4], 0
    %s11 = scalar_lea.sflag [#allocation4], 1
    %12 = vsyncpa %s11, 0
    loop: start=0, step=1, limit=4
    $region2: #{tpu_custom_call.1} parent=1 // loop_pre_header
      _
    $region3: #{tpu_custom_call.1} parent=1 // loop_header
      %s14 = sphi 0, %s18
      %p15 = scmp.ge.s32.totalorder %s14, 4
      %s24 = sphi 0, %s26
      %s27 = sphi 0, %s24
      %s28 = sphi 0, %s27
      %s44 = sphi 0, %s28
      %s48 = sphi 0, %s48
      %s50 = sphi 0, %s48
      %s51 = sphi 0, %s50
      %s65 = sphi 0, %s51
      %s69 = sphi 0, %s69
      %s71 = sphi 0, %s69
      %s72 = sphi 0, %s71
      %s86 = sphi 0, %s72
      %s90 = sphi 0, %s90
      %s92 = sphi 0, %s90
      %s93 = sphi 0, %s92
      %s107 = sphi 0, %s93
      %s111 = sphi 0, %s111
      %s113 = sphi 0, %s111
      %s114 = sphi 0, %s113
      %s128 = sphi 0, %s114
      %s134 = sphi 0, %s136
      %s137 = sphi 0, %s134
      %s138 = sphi 0, %s137
      %s154 = sphi 0, %s138
    $region4: #{tpu_custom_call.1} parent=1 // loop_header_branch
      %17 = sbr.rel (%p15) target = $region8
    $region5: #{tpu_custom_call.1} parent=1 // loop_body
      %s19 = ssub.s32 %s14, 1
      %s20 = ssub.s32 %s14, 2
      %s21 = sadd.s32 %s14, 1
      %s22 = ssub.s32 %s14, %s21
      %p23 = scmp.eq.s32.totalorder %s22, 0
      %s25 = sadd.s32 %s24, 1
      %s26 = scalar_select %p23, %s24, %s25
      %p29 = pneg %p23
      %p30 = scmp.eq.s32.totalorder %s14, 1
      %p31 = por %p29, %p30
      %p32 = scmp.ne.s32.totalorder %s24, %s27
      %p33 = scmp.eq.s32.totalorder %s14, 0
      %p34 = por %p32, %p33
      %p35 = scmp.ne.s32.totalorder %s24, %s27
      %p36 = scmp.eq.s32.totalorder %s19, 1
      %p37 = por %p35, %p36
      %p38 = scmp.ne.s32.totalorder %s27, %s28
      %p39 = scmp.eq.s32.totalorder %s19, 0
      %p40 = por %p38, %p39
      %p41 = scmp.ne.s32.totalorder %s27, %s28
      %p42 = scmp.eq.s32.totalorder %s20, 1
      %p43 = por %p41, %p42
      %p45 = scmp.ne.s32.totalorder %s28, %s44
      %p46 = scmp.eq.s32.totalorder %s20, 0
      %p47 = por %p45, %p46
      %s49 = sadd.s32 %s48, 1
      %p52 = scmp.eq.s32.totalorder %s14, 1
      %p53 = scmp.ne.s32.totalorder %s48, %s50
      %p54 = scmp.eq.s32.totalorder %s14, 0
      %p55 = por %p53, %p54
      %p56 = scmp.ne.s32.totalorder %s48, %s50
      %p57 = scmp.eq.s32.totalorder %s19, 1
      %p58 = por %p56, %p57
      %p59 = scmp.ne.s32.totalorder %s50, %s51
      %p60 = scmp.eq.s32.totalorder %s19, 0
      %p61 = por %p59, %p60
      %p62 = scmp.ne.s32.totalorder %s50, %s51
      %p63 = scmp.eq.s32.totalorder %s20, 1
      %p64 = por %p62, %p63
      %p66 = scmp.ne.s32.totalorder %s51, %s65
      %p67 = scmp.eq.s32.totalorder %s20, 0
      %p68 = por %p66, %p67
      %s70 = sadd.s32 %s69, 1
      %p73 = scmp.eq.s32.totalorder %s14, 1
      %p74 = scmp.ne.s32.totalorder %s69, %s71
      %p75 = scmp.eq.s32.totalorder %s14, 0
      %p76 = por %p74, %p75
      %p77 = scmp.ne.s32.totalorder %s69, %s71
      %p78 = scmp.eq.s32.totalorder %s19, 1
      %p79 = por %p77, %p78
      %p80 = scmp.ne.s32.totalorder %s71, %s72
      %p81 = scmp.eq.s32.totalorder %s19, 0
      %p82 = por %p80, %p81
      %p83 = scmp.ne.s32.totalorder %s71, %s72
      %p84 = scmp.eq.s32.totalorder %s20, 1
      %p85 = por %p83, %p84
      %p87 = scmp.ne.s32.totalorder %s72, %s86
      %p88 = scmp.eq.s32.totalorder %s20, 0
      %p89 = por %p87, %p88
      %s91 = sadd.s32 %s90, 1
      %p94 = scmp.eq.s32.totalorder %s14, 1
      %p95 = scmp.ne.s32.totalorder %s90, %s92
      %p96 = scmp.eq.s32.totalorder %s14, 0
      %p97 = por %p95, %p96
      %p98 = scmp.ne.s32.totalorder %s90, %s92
      %p99 = scmp.eq.s32.totalorder %s19, 1
      %p100 = por %p98, %p99
      %p101 = scmp.ne.s32.totalorder %s92, %s93
      %p102 = scmp.eq.s32.totalorder %s19, 0
      %p103 = por %p101, %p102
      %p104 = scmp.ne.s32.totalorder %s92, %s93
      %p105 = scmp.eq.s32.totalorder %s20, 1
      %p106 = por %p104, %p105
      %p108 = scmp.ne.s32.totalorder %s93, %s107
      %p109 = scmp.eq.s32.totalorder %s20, 0
      %p110 = por %p108, %p109
      %s112 = sadd.s32 %s111, 1
      %p115 = scmp.eq.s32.totalorder %s14, 1
      %p116 = scmp.ne.s32.totalorder %s111, %s113
      %p117 = scmp.eq.s32.totalorder %s14, 0
      %p118 = por %p116, %p117
      %p119 = scmp.ne.s32.totalorder %s111, %s113
      %p120 = scmp.eq.s32.totalorder %s19, 1
      %p121 = por %p119, %p120
      %p122 = scmp.ne.s32.totalorder %s113, %s114
      %p123 = scmp.eq.s32.totalorder %s19, 0
      %p124 = por %p122, %p123
      %p125 = scmp.ne.s32.totalorder %s113, %s114
      %p126 = scmp.eq.s32.totalorder %s20, 1
      %p127 = por %p125, %p126
      %p129 = scmp.ne.s32.totalorder %s114, %s128
      %p130 = scmp.eq.s32.totalorder %s20, 0
      %p131 = por %p129, %p130
      %s132 = ssub.s32 %s14, %s21
      %p133 = scmp.eq.s32.totalorder %s132, 0
      %s135 = sadd.s32 %s134, 1
      %s136 = scalar_select %p133, %s134, %s135
      %p139 = pneg %p133
      %p140 = scmp.eq.s32.totalorder %s14, 1
      %p141 = por %p139, %p140
      %p142 = scmp.ne.s32.totalorder %s134, %s137
      %p143 = scmp.eq.s32.totalorder %s14, 0
      %p144 = por %p142, %p143
      %p145 = scmp.ne.s32.totalorder %s134, %s137
      %p146 = scmp.eq.s32.totalorder %s19, 1
      %p147 = por %p145, %p146
      %p148 = scmp.ne.s32.totalorder %s137, %s138
      %p149 = scmp.eq.s32.totalorder %s19, 0
      %p150 = por %p148, %p149
      %p151 = scmp.ne.s32.totalorder %s137, %s138
      %p152 = scmp.eq.s32.totalorder %s20, 1
      %p153 = por %p151, %p152
      %p155 = scmp.ne.s32.totalorder %s138, %s154
      %p156 = scmp.eq.s32.totalorder %s20, 0
      %p157 = por %p155, %p156
      %p158 = scmp.le.s32.totalorder 1, %s14
      %p159 = scmp.lt.s32.totalorder %s14, 3
      %p160 = pnand %p158, %p159
      %p161 = pneg %p160
      // Predicated region
      $region9: #{tpu_custom_call.1} parent=5 // pred_check
        _
      $region10: #{tpu_custom_call.1} parent=5 // pred_check_branch
        %163 = sbr.rel (%p160) target = $region12
      $region11: #{tpu_custom_call.1} parent=5 // pred_region
        %s164 = ssub.s32 %s14, 1
        // Predicated region
        $region13: #{tpu_custom_call.1} parent=11 // pred_check
          %p165 = pneg %p61
        $region14: #{tpu_custom_call.1} parent=11 // pred_check_branch
          %167 = sbr.rel (%p165) target = $region16
        $region15: #{tpu_custom_call.1} parent=11 // pred_region
          _
        $region16: #{tpu_custom_call.1} parent=11 // pred_fallthru
          _
        // Predicated region
        $region17: #{tpu_custom_call.1} parent=11 // pred_check
          %p168 = pneg %p82
        $region18: #{tpu_custom_call.1} parent=11 // pred_check_branch
          %170 = sbr.rel (%p168) target = $region20
        $region19: #{tpu_custom_call.1} parent=11 // pred_region
          _
        $region20: #{tpu_custom_call.1} parent=11 // pred_fallthru
          _
        // Predicated region
        $region21: #{tpu_custom_call.1} parent=11 // pred_check
          %p171 = pneg %p103
        $region22: #{tpu_custom_call.1} parent=11 // pred_check_branch
          %173 = sbr.rel (%p171) target = $region24
        $region23: #{tpu_custom_call.1} parent=11 // pred_region
          _
        $region24: #{tpu_custom_call.1} parent=11 // pred_fallthru
          _
        // Predicated region
        $region25: #{tpu_custom_call.1} parent=11 // pred_check
          %p174 = pneg %p124
        $region26: #{tpu_custom_call.1} parent=11 // pred_check_branch
          %176 = sbr.rel (%p174) target = $region28
        $region27: #{tpu_custom_call.1} parent=11 // pred_region
          _
        $region28: #{tpu_custom_call.1} parent=11 // pred_fallthru
          _
      $region12: #{tpu_custom_call.1} parent=5 // pred_fallthru
        _
      %p177 = scmp.lt.s32.totalorder %s14, 2
      // Predicated region
      $region29: #{tpu_custom_call.1} parent=5 // pred_check
        %p178 = pneg %p177
      $region30: #{tpu_custom_call.1} parent=5 // pred_check_branch
        %180 = sbr.rel (%p178) target = $region32
      $region31: #{tpu_custom_call.1} parent=5 // pred_region
        // Predicated region
        $region33: #{tpu_custom_call.1} parent=31 // pred_check
          %p181 = pneg %p34
        $region34: #{tpu_custom_call.1} parent=31 // pred_check_branch
          %183 = sbr.rel (%p181) target = $region36
        $region35: #{tpu_custom_call.1} parent=31 // pred_region
          %p184 = scmp.lt.s32.totalorder %s14, 1
          %s185 = scalar_select %p184, %s14, 1
          %s186 = smul.addr %s185, 8
          %s187 = smul.addr %s186, 4
          %s188 = scalar_lea.vmem %s0, %s187
        $region36: #{tpu_custom_call.1} parent=31 // pred_fallthru
          _
      $region32: #{tpu_custom_call.1} parent=5 // pred_fallthru
        _
      %p189 = scmp.le.s32.totalorder 1, %s14
      %p190 = scmp.lt.s32.totalorder %s14, 3
      %p191 = pnand %p189, %p190
      %p192 = pneg %p191
      // Predicated region
      $region37: #{tpu_custom_call.1} parent=5 // pred_check
        _
      $region38: #{tpu_custom_call.1} parent=5 // pred_check_branch
        %194 = sbr.rel (%p191) target = $region40
      $region39: #{tpu_custom_call.1} parent=5 // pred_region
        %s195 = ssub.s32 %s14, 1
        %p196 = scmp.lt.s32.totalorder %s19, 1
        %s197 = scalar_select %p196, %s19, 1
        %s198 = smul.addr %s197, 8
        %s199 = smul.addr %s198, 4
        %s200 = scalar_lea.vmem %s0, %s199
        %p201 = pneg %p40
        %p202 = pneg %p37
        %p203 = pneg %p61
        %p204 = pneg %p58
        %p205 = pneg %p82
        %p206 = pneg %p79
        %p207 = pneg %p103
        %p208 = pneg %p100
        %p209 = pneg %p124
        %p210 = pneg %p121
        %p211 = pneg %p150
        %p212 = pneg %p147
        %s213 = sand.u32 %s137, 1
        %s214 = scalar_lea.sflag [#allocation4], %s213
        %s215 = sand.u32 %s137, 1
        %s216 = smul.addr %s215, 32
        %s217 = scalar_lea.vmem [#allocation3], %s216
        %p218 = scmp.lt.s32.totalorder %s19, 1
        %s219 = scalar_select %p218, %s19, 1
        %s220 = smul.addr %s219, 8
        %s221 = smul.addr %s220, 4
        %s222 = scalar_lea.vmem %s0, %s221
        %v224 = vld [vmem:[%s222] sm:$0xf]
        %v225 = vld [vmem:[%s222 + $0x4] sm:$0xf]
        %v226 = vld [vmem:[%s222 + $0x8] sm:$0xf]
        %v227 = vld [vmem:[%s222 + $0xc] sm:$0xf]
        %v228 = vld [vmem:[%s222 + $0x10] sm:$0xf]
        %v229 = vld [vmem:[%s222 + $0x14] sm:$0xf]
        %v230 = vld [vmem:[%s222 + $0x18] sm:$0xf]
        %v231 = vld [vmem:[%s222 + $0x1c] sm:$0xf]
        %v232 = vld [vmem:[%s1] sm:$0xff]
        %v233 = vld [vmem:[%s1 + $0x8] sm:$0xff]
        %v234 = vld [vmem:[%s1 + $0x10] sm:$0xff]
        %v235 = vld [vmem:[%s1 + $0x18] sm:$0xff]
        %v236 = vld [vmem:[%s2] sm:$0x3]
        %v238 = vlaneseq
        %v239 = vshrl.u32 %v238, 7
        %v240 = vsub.s32 0, %v239
        %v241 = vrot.slane %v236, %v240
        %v242 = vlaneseq
        %v243 = vshrl.u32 %v242, 7
        %v244 = vsub.s32 1, %v243
        %v245 = vrot.slane %v236, %v244
        %v256 = vunpack.c.l.b16 %v224
        %v257 = vunpack.c.l.b16 %v225
        %v258 = vunpack.c.l.b16 %v226
        %v259 = vunpack.c.l.b16 %v227
        %v260 = vunpack.c.l.b16 %v228
        %v261 = vunpack.c.l.b16 %v229
        %v262 = vunpack.c.l.b16 %v230
        %v263 = vunpack.c.l.b16 %v231
        %v264 = vpack.c.b16 %v257, %v256
        %v265 = vpack.c.b16 %v259, %v258
        %v266 = vpack.c.b16 %v261, %v260
        %v267 = vpack.c.b16 %v263, %v262
        %v272 = vunpack.c.l.b16 %v232
        %v273 = vunpack.c.h.b16 %v232
        %v274 = vunpack.c.l.b16 %v233
        %v275 = vunpack.c.h.b16 %v233
        %v276 = vunpack.c.l.b16 %v234
        %v277 = vunpack.c.h.b16 %v234
        %v278 = vunpack.c.l.b16 %v235
        %v279 = vunpack.c.h.b16 %v235
        %v280 = vpack.c.b16 %v274, %v272
        %v281 = vpack.c.b16 %v275, %v273
        %v282 = vpack.c.b16 %v278, %v276
        %v283 = vpack.c.b16 %v279, %v277
        %vm288 = vcmask 261120
        %v290 = vsel %vm288, %v264, 0
        %v293 = vsel %vm288, %v265, 0
        %v296 = vsel %vm288, %v266, 0
        %v299 = vsel %vm288, %v267, 0
        %301 = vmatprep.subr.bf16.mxu0 0
        %302 = vmatpush1.bf16.msra.mxu0 0
        %303 = vmatprep.subr.bf16.mxu0 0
        %304 = vmatpush1.bf16.msra.mxu0 0
        %305 = vmatprep.subr.bf16.mxu0 0
        %306 = vmatpush1.bf16.msra.mxu0 0
        %307 = vmatprep.subr.bf16.mxu0 0
        %308 = vmatpush1.bf16.msra.mxu0 0
        %309 = vmatprep.subr.bf16.mxu0 0
        %310 = vmatpush1.bf16.msra.mxu0 0
        %311 = vmatprep.subr.bf16.mxu0 0
        %312 = vmatpush1.bf16.msra.mxu0 0
        %313 = vmatprep.subr.bf16.mxu0 %v283
        %314 = vmatpush1.bf16.msra.mxu0 %v282
        %315 = vmatprep.subr.bf16.mxu0 %v281
        %316 = vmatpush1.bf16.msra.mxu0 %v280
        %317 = vmatprep.subr.bf16.mxu0 0
        %318 = vmatpush2.bf16.msra.mxu0 0
        %319 = vmatprep.subr.bf16.mxu0 0
        %320 = vmatpush2.bf16.msra.mxu0 0
        %321 = vmatprep.subr.bf16.mxu0 0
        %322 = vmatpush2.bf16.msra.mxu0 0
        %323 = vmatprep.subr.bf16.mxu0 0
        %324 = vmatpush2.bf16.msra.mxu0 0
        %325 = vmatprep.subr.bf16.mxu0 0
        %326 = vmatpush2.bf16.msra.mxu0 0
        %327 = vmatprep.subr.bf16.mxu0 0
        %328 = vmatpush2.bf16.msra.mxu0 0
        %329 = vmatprep.subr.bf16.mxu0 0
        %330 = vmatpush2.bf16.msra.mxu0 0
        %331 = vmatprep.subr.bf16.mxu0 0
        %332 = vmatpush2.bf16.msra.mxu0 0
        %333 = vmatprep.mubr.bf16.mxu0 0
        %334 = vmatmul.mubr.bf16.gmra.mxu0 %v290
        %v335 = vpop.f32.mrf.mxu0
        %v336 = vadd.f32 %v241, %v335
        %v337 = vpop.f32.mrf.mxu0
        %v338 = vadd.f32 %v245, %v337
        %v339 = vpop.f32.mrf.mxu0
        %v340 = vadd.f32 %v241, %v339
        %v341 = vpop.f32.mrf.mxu0
        %v342 = vadd.f32 %v245, %v341
        %343 = vmatprep.mubr.bf16.mxu0 0
        %344 = vmatmul.mubr.bf16.gmra.mxu0 %v293
        %v345 = vpop.f32.mrf.mxu0
        %v346 = vadd.f32 %v241, %v345
        %v347 = vpop.f32.mrf.mxu0
        %v348 = vadd.f32 %v245, %v347
        %v349 = vpop.f32.mrf.mxu0
        %v350 = vadd.f32 %v241, %v349
        %v351 = vpop.f32.mrf.mxu0
        %v352 = vadd.f32 %v245, %v351
        %353 = vmatprep.mubr.bf16.mxu0 0
        %354 = vmatmul.mubr.bf16.gmra.mxu0 %v296
        %v355 = vpop.f32.mrf.mxu0
        %v356 = vadd.f32 %v241, %v355
        %v357 = vpop.f32.mrf.mxu0
        %v358 = vadd.f32 %v245, %v357
        %v359 = vpop.f32.mrf.mxu0
        %v360 = vadd.f32 %v241, %v359
        %v361 = vpop.f32.mrf.mxu0
        %v362 = vadd.f32 %v245, %v361
        %363 = vmatprep.mubr.bf16.mxu0 0
        %364 = vmatmul.mubr.bf16.gmra.mxu0 %v299
        %v365 = vpop.f32.mrf.mxu0
        %v366 = vadd.f32 %v241, %v365
        %v367 = vpop.f32.mrf.mxu0
        %v368 = vadd.f32 %v245, %v367
        %v369 = vpop.f32.mrf.mxu0
        %v370 = vadd.f32 %v241, %v369
        %v371 = vpop.f32.mrf.mxu0
        %v372 = vadd.f32 %v245, %v371
        %373 = vdwg.mxu0
        %382 = vrot.lane.b32.xlu0 %v336, 96
        %v383 = vpop.permute.xlu0 %382
        %384 = vrot.lane.b32.xlu0 %v340, 96
        %v385 = vpop.permute.xlu0 %384
        %386 = vrot.lane.b32.xlu0 %v346, 96
        %v387 = vpop.permute.xlu0 %386
        %388 = vrot.lane.b32.xlu0 %v350, 96
        %v389 = vpop.permute.xlu0 %388
        %390 = vrot.lane.b32.xlu0 %v356, 96
        %v391 = vpop.permute.xlu0 %390
        %392 = vrot.lane.b32.xlu0 %v360, 96
        %v393 = vpop.permute.xlu0 %392
        %394 = vrot.lane.b32.xlu0 %v366, 96
        %v395 = vpop.permute.xlu0 %394
        %396 = vrot.lane.b32.xlu0 %v370, 96
        %v397 = vpop.permute.xlu0 %396
        %vm398 = vcmask 130048
        %v399 = vsel %vm398, %v336, 0
        %v401 = vsel %vm398, %v340, 0
        %v403 = vsel %vm398, %v346, 0
        %v405 = vsel %vm398, %v350, 0
        %v407 = vsel %vm398, %v356, 0
        %v409 = vsel %vm398, %v360, 0
        %v411 = vsel %vm398, %v366, 0
        %v413 = vsel %vm398, %v370, 0
        %v415 = vsel %vm398, %v383, 0
        %v417 = vsel %vm398, %v385, 0
        %v419 = vsel %vm398, %v387, 0
        %v421 = vsel %vm398, %v389, 0
        %v423 = vsel %vm398, %v391, 0
        %v425 = vsel %vm398, %v393, 0
        %v427 = vsel %vm398, %v395, 0
        %v429 = vsel %vm398, %v397, 0
        %431 = vmatprep.subr.mxu0 0.0
        %432 = vmatpush1.xpose.msra.mxu0 0.0
        %433 = vmatprep.subr.mxu0 0.0
        %434 = vmatpush1.xpose.msra.mxu0 0.0
        %435 = vmatprep.subr.mxu0 0.0
        %436 = vmatpush1.xpose.msra.mxu0 0.0
        %437 = vmatprep.subr.mxu0 0.0
        %438 = vmatpush1.xpose.msra.mxu0 0.0
        %439 = vmatprep.subr.mxu0 0.0
        %440 = vmatpush1.xpose.msra.mxu0 0.0
        %441 = vmatprep.subr.mxu0 0.0
        %442 = vmatpush1.xpose.msra.mxu0 0.0
        %443 = vmatprep.subr.mxu0 0.0
        %444 = vmatpush1.xpose.msra.mxu0 0.0
        %445 = vmatprep.subr.mxu0 0.0
        %446 = vmatpush1.xpose.msra.mxu0 0.0
        %447 = vmatprep.subr.mxu0 0.0
        %448 = vmatpush1.xpose.msra.mxu0 %v429
        %449 = vmatprep.subr.mxu0 0.0
        %450 = vmatpush1.xpose.msra.mxu0 %v427
        %451 = vmatprep.subr.mxu0 0.0
        %452 = vmatpush1.xpose.msra.mxu0 %v425
        %453 = vmatprep.subr.mxu0 0.0
        %454 = vmatpush1.xpose.msra.mxu0 %v423
        %455 = vmatprep.subr.mxu0 0.0
        %456 = vmatpush1.xpose.msra.mxu0 %v421
        %457 = vmatprep.subr.mxu0 0.0
        %458 = vmatpush1.xpose.msra.mxu0 %v419
        %459 = vmatprep.subr.mxu0 0.0
        %460 = vmatpush1.xpose.msra.mxu0 %v417
        %461 = vmatprep.subr.mxu0 0.0
        %462 = vmatpush1.xpose.msra.mxu0 %v415
        %463 = vmatprep.subr.mxu0 0.0
        %464 = vmatpush2.xpose.msra.mxu0 0.0
        %465 = vmatprep.subr.mxu0 0.0
        %466 = vmatpush2.xpose.msra.mxu0 0.0
        %467 = vmatprep.subr.mxu0 0.0
        %468 = vmatpush2.xpose.msra.mxu0 0.0
        %469 = vmatprep.subr.mxu0 0.0
        %470 = vmatpush2.xpose.msra.mxu0 0.0
        %471 = vmatprep.subr.mxu0 0.0
        %472 = vmatpush2.xpose.msra.mxu0 0.0
        %473 = vmatprep.subr.mxu0 0.0
        %474 = vmatpush2.xpose.msra.mxu0 0.0
        %475 = vmatprep.subr.mxu0 0.0
        %476 = vmatpush2.xpose.msra.mxu0 0.0
        %477 = vmatprep.subr.mxu0 0.0
        %478 = vmatpush2.xpose.msra.mxu0 0.0
        %479 = vmatprep.subr.mxu0 0.0
        %480 = vmatpush2.xpose.msra.mxu0 0.0
        %481 = vmatprep.subr.mxu0 0.0
        %482 = vmatpush2.xpose.msra.mxu0 0.0
        %483 = vmatprep.subr.mxu0 0.0
        %484 = vmatpush2.xpose.msra.mxu0 0.0
        %485 = vmatprep.subr.mxu0 0.0
        %486 = vmatpush2.xpose.msra.mxu0 0.0
        %487 = vmatprep.subr.mxu0 0.0
        %488 = vmatpush2.xpose.msra.mxu0 0.0
        %489 = vmatprep.subr.mxu0 0.0
        %490 = vmatpush2.xpose.msra.mxu0 0.0
        %491 = vmatprep.subr.mxu0 0.0
        %492 = vmatpush2.xpose.msra.mxu0 0.0
        %493 = vmatprep.subr.mxu0 0.0
        %494 = vmatpush2.xpose.msra.mxu0 0.0
        %495 = vmatprep.mubr.f32.mxu0 0.0
        %496 = vmatmul.mubr.f32.gmra.mxu0 %v399
        %v497 = vpop.f32.mrf.mxu0
        %v498 = vadd.f32 0.0, %v497
        %v499 = vpop.f32.mrf.mxu0
        %500 = vmatprep.mubr.f32.mxu0 0.0
        %501 = vmatmul.mubr.f32.gmra.mxu0 %v401
        %v502 = vpop.f32.mrf.mxu0
        %v503 = vadd.f32 0.0, %v502
        %v504 = vpop.f32.mrf.mxu0
        %505 = vmatprep.mubr.f32.mxu0 0.0
        %506 = vmatmul.mubr.f32.gmra.mxu0 %v403
        %v507 = vpop.f32.mrf.mxu0
        %v508 = vadd.f32 0.0, %v507
        %v509 = vpop.f32.mrf.mxu0
        %510 = vmatprep.mubr.f32.mxu0 0.0
        %511 = vmatmul.mubr.f32.gmra.mxu0 %v405
        %v512 = vpop.f32.mrf.mxu0
        %v513 = vadd.f32 0.0, %v512
        %v514 = vpop.f32.mrf.mxu0
        %515 = vmatprep.mubr.f32.mxu0 0.0
        %516 = vmatmul.mubr.f32.gmra.mxu0 %v407
        %v517 = vpop.f32.mrf.mxu0
        %v518 = vadd.f32 0.0, %v517
        %v519 = vpop.f32.mrf.mxu0
        %520 = vmatprep.mubr.f32.mxu0 0.0
        %521 = vmatmul.mubr.f32.gmra.mxu0 %v409
        %v522 = vpop.f32.mrf.mxu0
        %v523 = vadd.f32 0.0, %v522
        %v524 = vpop.f32.mrf.mxu0
        %525 = vmatprep.mubr.f32.mxu0 0.0
        %526 = vmatmul.mubr.f32.gmra.mxu0 %v411
        %v527 = vpop.f32.mrf.mxu0
        %v528 = vadd.f32 0.0, %v527
        %v529 = vpop.f32.mrf.mxu0
        %530 = vmatprep.mubr.f32.mxu0 0.0
        %531 = vmatmul.mubr.f32.gmra.mxu0 %v413
        %v532 = vpop.f32.mrf.mxu0
        %v533 = vadd.f32 0.0, %v532
        %v534 = vpop.f32.mrf.mxu0
        %535 = vdwg.mxu0
        %vm536 = vcmask 523264
        %v537 = vsel %vm536, %v498, -inf
        %538 = vmax.xlane.f32.xlu0 %v537
        %v539 = vpop.xlane.xlu0 %538
        %v540 = vsel %vm536, %v503, -inf
        %541 = vmax.xlane.f32.xlu0 %v540
        %v542 = vpop.xlane.xlu0 %541
        %v543 = vsel %vm536, %v508, -inf
        %544 = vmax.xlane.f32.xlu0 %v543
        %v545 = vpop.xlane.xlu0 %544
        %v546 = vsel %vm536, %v513, -inf
        %547 = vmax.xlane.f32.xlu0 %v546
        %v548 = vpop.xlane.xlu0 %547
        %v549 = vsel %vm536, %v518, -inf
        %550 = vmax.xlane.f32.xlu0 %v549
        %v551 = vpop.xlane.xlu0 %550
        %v552 = vsel %vm536, %v523, -inf
        %553 = vmax.xlane.f32.xlu0 %v552
        %v554 = vpop.xlane.xlu0 %553
        %v555 = vsel %vm536, %v528, -inf
        %556 = vmax.xlane.f32.xlu0 %v555
        %v557 = vpop.xlane.xlu0 %556
        %v558 = vsel %vm536, %v533, -inf
        %559 = vmax.xlane.f32.xlu0 %v558
        %v560 = vpop.xlane.xlu0 %559
        %v561 = vsub.f32 %v498, %v539
        %v562 = vsub.f32 %v503, %v542
        %v563 = vsub.f32 %v508, %v545
        %v564 = vsub.f32 %v513, %v548
        %v565 = vsub.f32 %v518, %v551
        %v566 = vsub.f32 %v523, %v554
        %v567 = vsub.f32 %v528, %v557
        %v568 = vsub.f32 %v533, %v560
        %v569 = vmul.f32 %v561, 1.442695
        %v570 = vpow.pop %v569
        %v571 = vmul.f32 %v562, 1.442695
        %v572 = vpow.pop %v571
        %v573 = vmul.f32 %v563, 1.442695
        %v574 = vpow.pop %v573
        %v575 = vmul.f32 %v564, 1.442695
        %v576 = vpow.pop %v575
        %v577 = vmul.f32 %v565, 1.442695
        %v578 = vpow.pop %v577
        %v579 = vmul.f32 %v566, 1.442695
        %v580 = vpow.pop %v579
        %v581 = vmul.f32 %v567, 1.442695
        %v582 = vpow.pop %v581
        %v583 = vmul.f32 %v568, 1.442695
        %v584 = vpow.pop %v583
        %v585 = vsel %vm536, %v570, 0.0
        %586 = vadd.xlane.f32.xlu0 %v585
        %v587 = vpop.xlane.xlu0 %586
        %v588 = vsel %vm536, %v572, 0.0
        %589 = vadd.xlane.f32.xlu0 %v588
        %v590 = vpop.xlane.xlu0 %589
        %v591 = vsel %vm536, %v574, 0.0
        %592 = vadd.xlane.f32.xlu0 %v591
        %v593 = vpop.xlane.xlu0 %592
        %v594 = vsel %vm536, %v576, 0.0
        %595 = vadd.xlane.f32.xlu0 %v594
        %v596 = vpop.xlane.xlu0 %595
        %v597 = vsel %vm536, %v578, 0.0
        %598 = vadd.xlane.f32.xlu0 %v597
        %v599 = vpop.xlane.xlu0 %598
        %v600 = vsel %vm536, %v580, 0.0
        %601 = vadd.xlane.f32.xlu0 %v600
        %v602 = vpop.xlane.xlu0 %601
        %v603 = vsel %vm536, %v582, 0.0
        %604 = vadd.xlane.f32.xlu0 %v603
        %v605 = vpop.xlane.xlu0 %604
        %v606 = vsel %vm536, %v584, 0.0
        %607 = vadd.xlane.f32.xlu0 %v606
        %v608 = vpop.xlane.xlu0 %607
        %v609 = vrcp.pop %v587
        %v610 = vrcp.pop %v590
        %v611 = vrcp.pop %v593
        %v612 = vrcp.pop %v596
        %v613 = vrcp.pop %v599
        %v614 = vrcp.pop %v602
        %v615 = vrcp.pop %v605
        %v616 = vrcp.pop %v608
        %v617 = vmul.f32 %v570, %v609
        %v618 = vmul.f32 %v572, %v610
        %v619 = vmul.f32 %v574, %v611
        %v620 = vmul.f32 %v576, %v612
        %v621 = vmul.f32 %v578, %v613
        %v622 = vmul.f32 %v580, %v614
        %v623 = vmul.f32 %v582, %v615
        %v624 = vmul.f32 %v584, %v616
        %625 = vrot.lane.b32.xlu0 %v336, 64
        %v626 = vpop.permute.xlu0 %625
        %627 = vrot.lane.b32.xlu0 %v340, 64
        %v628 = vpop.permute.xlu0 %627
        %629 = vrot.lane.b32.xlu0 %v346, 64
        %v630 = vpop.permute.xlu0 %629
        %631 = vrot.lane.b32.xlu0 %v350, 64
        %v632 = vpop.permute.xlu0 %631
        %633 = vrot.lane.b32.xlu0 %v356, 64
        %v634 = vpop.permute.xlu0 %633
        %635 = vrot.lane.b32.xlu0 %v360, 64
        %v636 = vpop.permute.xlu0 %635
        %637 = vrot.lane.b32.xlu0 %v366, 64
        %v638 = vpop.permute.xlu0 %637
        %639 = vrot.lane.b32.xlu0 %v370, 64
        %v640 = vpop.permute.xlu0 %639
        %v650 = vsel %vm536, %v617, 0
        %v653 = vsel %vm536, %v618, 0
        %v656 = vsel %vm536, %v619, 0
        %v659 = vsel %vm536, %v620, 0
        %v662 = vsel %vm536, %v621, 0
        %v665 = vsel %vm536, %v622, 0
        %v668 = vsel %vm536, %v623, 0
        %v671 = vsel %vm536, %v624, 0
        %673 = vmatprep.subr.mxu0 0.0
        %674 = vmatpush1.msra.mxu0 0.0
        %675 = vmatprep.subr.mxu0 0.0
        %676 = vmatpush1.msra.mxu0 0.0
        %677 = vmatprep.subr.mxu0 0.0
        %678 = vmatpush1.msra.mxu0 0.0
        %679 = vmatprep.subr.mxu0 0.0
        %680 = vmatpush1.msra.mxu0 0.0
        %681 = vmatprep.subr.mxu0 0.0
        %682 = vmatpush1.msra.mxu0 0.0
        %683 = vmatprep.subr.mxu0 0.0
        %684 = vmatpush1.msra.mxu0 0.0
        %685 = vmatprep.subr.mxu0 0.0
        %686 = vmatpush1.msra.mxu0 0.0
        %687 = vmatprep.subr.mxu0 0.0
        %688 = vmatpush1.msra.mxu0 0.0
        %689 = vmatprep.subr.mxu0 0.0
        %690 = vmatpush1.msra.mxu0 %v640
        %691 = vmatprep.subr.mxu0 0.0
        %692 = vmatpush1.msra.mxu0 %v638
        %693 = vmatprep.subr.mxu0 0.0
        %694 = vmatpush1.msra.mxu0 %v636
        %695 = vmatprep.subr.mxu0 0.0
        %696 = vmatpush1.msra.mxu0 %v634
        %697 = vmatprep.subr.mxu0 0.0
        %698 = vmatpush1.msra.mxu0 %v632
        %699 = vmatprep.subr.mxu0 0.0
        %700 = vmatpush1.msra.mxu0 %v630
        %701 = vmatprep.subr.mxu0 0.0
        %702 = vmatpush1.msra.mxu0 %v628
        %703 = vmatprep.subr.mxu0 0.0
        %704 = vmatpush1.msra.mxu0 %v626
        %705 = vmatprep.subr.mxu0 0.0
        %706 = vmatpush2.msra.mxu0 0.0
        %707 = vmatprep.subr.mxu0 0.0
        %708 = vmatpush2.msra.mxu0 0.0
        %709 = vmatprep.subr.mxu0 0.0
        %710 = vmatpush2.msra.mxu0 0.0
        %711 = vmatprep.subr.mxu0 0.0
        %712 = vmatpush2.msra.mxu0 0.0
        %713 = vmatprep.subr.mxu0 0.0
        %714 = vmatpush2.msra.mxu0 0.0
        %715 = vmatprep.subr.mxu0 0.0
        %716 = vmatpush2.msra.mxu0 0.0
        %717 = vmatprep.subr.mxu0 0.0
        %718 = vmatpush2.msra.mxu0 0.0
        %719 = vmatprep.subr.mxu0 0.0
        %720 = vmatpush2.msra.mxu0 0.0
        %721 = vmatprep.subr.mxu0 0.0
        %722 = vmatpush2.msra.mxu0 0.0
        %723 = vmatprep.subr.mxu0 0.0
        %724 = vmatpush2.msra.mxu0 0.0
        %725 = vmatprep.subr.mxu0 0.0
        %726 = vmatpush2.msra.mxu0 0.0
        %727 = vmatprep.subr.mxu0 0.0
        %728 = vmatpush2.msra.mxu0 0.0
        %729 = vmatprep.subr.mxu0 0.0
        %730 = vmatpush2.msra.mxu0 0.0
        %731 = vmatprep.subr.mxu0 0.0
        %732 = vmatpush2.msra.mxu0 0.0
        %733 = vmatprep.subr.mxu0 0.0
        %734 = vmatpush2.msra.mxu0 0.0
        %735 = vmatprep.subr.mxu0 0.0
        %736 = vmatpush2.msra.mxu0 0.0
        %737 = vmatprep.mubr.f32.mxu0 0.0
        %738 = vmatmul.mubr.f32.gmra.mxu0 %v650
        %v739 = vpop.f32.mrf.mxu0
        %v740 = vadd.f32 0.0, %v739
        %v741 = vpop.f32.mrf.mxu0
        %742 = vmatprep.mubr.f32.mxu0 0.0
        %743 = vmatmul.mubr.f32.gmra.mxu0 %v653
        %v744 = vpop.f32.mrf.mxu0
        %v745 = vadd.f32 0.0, %v744
        %v746 = vpop.f32.mrf.mxu0
        %747 = vmatprep.mubr.f32.mxu0 0.0
        %748 = vmatmul.mubr.f32.gmra.mxu0 %v656
        %v749 = vpop.f32.mrf.mxu0
        %v750 = vadd.f32 0.0, %v749
        %v751 = vpop.f32.mrf.mxu0
        %752 = vmatprep.mubr.f32.mxu0 0.0
        %753 = vmatmul.mubr.f32.gmra.mxu0 %v659
        %v754 = vpop.f32.mrf.mxu0
        %v755 = vadd.f32 0.0, %v754
        %v756 = vpop.f32.mrf.mxu0
        %757 = vmatprep.mubr.f32.mxu0 0.0
        %758 = vmatmul.mubr.f32.gmra.mxu0 %v662
        %v759 = vpop.f32.mrf.mxu0
        %v760 = vadd.f32 0.0, %v759
        %v761 = vpop.f32.mrf.mxu0
        %762 = vmatprep.mubr.f32.mxu0 0.0
        %763 = vmatmul.mubr.f32.gmra.mxu0 %v665
        %v764 = vpop.f32.mrf.mxu0
        %v765 = vadd.f32 0.0, %v764
        %v766 = vpop.f32.mrf.mxu0
        %767 = vmatprep.mubr.f32.mxu0 0.0
        %768 = vmatmul.mubr.f32.gmra.mxu0 %v668
        %v769 = vpop.f32.mrf.mxu0
        %v770 = vadd.f32 0.0, %v769
        %v771 = vpop.f32.mrf.mxu0
        %772 = vmatprep.mubr.f32.mxu0 0.0
        %773 = vmatmul.mubr.f32.gmra.mxu0 %v671
        %v774 = vpop.f32.mrf.mxu0
        %v775 = vadd.f32 0.0, %v774
        %v776 = vpop.f32.mrf.mxu0
        %777 = vdwg.mxu0
        %v778 = vpack.c.bf16 %v745, %v740
        %v779 = vpack.c.bf16 %v755, %v750
        %v780 = vpack.c.bf16 %v765, %v760
        %v781 = vpack.c.bf16 %v775, %v770
        %v786 = vunpack.c.l.b16 %v778
        %v787 = vunpack.c.h.b16 %v778
        %v788 = vunpack.c.l.b16 %v779
        %v789 = vunpack.c.h.b16 %v779
        %v790 = vunpack.c.l.b16 %v780
        %v791 = vunpack.c.h.b16 %v780
        %v792 = vunpack.c.l.b16 %v781
        %v793 = vunpack.c.h.b16 %v781
        %v794 = vpack.c.b16 %v786, %v786
        %v795 = vpack.c.b16 %v787, %v787
        %v796 = vpack.c.b16 %v788, %v788
        %v797 = vpack.c.b16 %v789, %v789
        %v798 = vpack.c.b16 %v790, %v790
        %v799 = vpack.c.b16 %v791, %v791
        %v800 = vpack.c.b16 %v792, %v792
        %v801 = vpack.c.b16 %v793, %v793
        %vm810 = vcmask 519168
        %811 = vst.msk [vmem:[#allocation2] sm:$0xf] %vm810, %v794
        %812 = vst.msk [vmem:[#allocation2 + $0x4] sm:$0xf] %vm810, %v795
        %813 = vst.msk [vmem:[#allocation2 + $0x8] sm:$0xf] %vm810, %v796
        %814 = vst.msk [vmem:[#allocation2 + $0xc] sm:$0xf] %vm810, %v797
        %815 = vst.msk [vmem:[#allocation2 + $0x10] sm:$0xf] %vm810, %v798
        %816 = vst.msk [vmem:[#allocation2 + $0x14] sm:$0xf] %vm810, %v799
        %817 = vst.msk [vmem:[#allocation2 + $0x18] sm:$0xf] %vm810, %v800
        %818 = vst.msk [vmem:[#allocation2 + $0x1c] sm:$0xf] %vm810, %v801
        %819 = vrot.lane.b32.xlu0 %v336, 112
        %v820 = vpop.permute.xlu0 %819
        %821 = vrot.lane.b32.xlu0 %v340, 112
        %v822 = vpop.permute.xlu0 %821
        %823 = vrot.lane.b32.xlu0 %v346, 112
        %v824 = vpop.permute.xlu0 %823
        %825 = vrot.lane.b32.xlu0 %v350, 112
        %v826 = vpop.permute.xlu0 %825
        %827 = vrot.lane.b32.xlu0 %v356, 112
        %v828 = vpop.permute.xlu0 %827
        %829 = vrot.lane.b32.xlu0 %v360, 112
        %v830 = vpop.permute.xlu0 %829
        %831 = vrot.lane.b32.xlu0 %v366, 112
        %v832 = vpop.permute.xlu0 %831
        %833 = vrot.lane.b32.xlu0 %v370, 112
        %v834 = vpop.permute.xlu0 %833
        %835 = vrot.lane.b32.xlu0 %v336, 80
        %v836 = vpop.permute.xlu0 %835
        %837 = vrot.lane.b32.xlu0 %v340, 80
        %v838 = vpop.permute.xlu0 %837
        %839 = vrot.lane.b32.xlu0 %v346, 80
        %v840 = vpop.permute.xlu0 %839
        %841 = vrot.lane.b32.xlu0 %v350, 80
        %v842 = vpop.permute.xlu0 %841
        %843 = vrot.lane.b32.xlu0 %v356, 80
        %v844 = vpop.permute.xlu0 %843
        %845 = vrot.lane.b32.xlu0 %v360, 80
        %v846 = vpop.permute.xlu0 %845
        %847 = vrot.lane.b32.xlu0 %v366, 80
        %v848 = vpop.permute.xlu0 %847
        %849 = vrot.lane.b32.xlu0 %v370, 80
        %v850 = vpop.permute.xlu0 %849
        %v851 = vsel %vm398, %v820, 0
        %v853 = vsel %vm398, %v822, 0
        %v855 = vsel %vm398, %v824, 0
        %v857 = vsel %vm398, %v826, 0
        %v859 = vsel %vm398, %v828, 0
        %v861 = vsel %vm398, %v830, 0
        %v863 = vsel %vm398, %v832, 0
        %v865 = vsel %vm398, %v834, 0
        %v867 = vsel %vm398, %v836, 0
        %v869 = vsel %vm398, %v838, 0
        %v871 = vsel %vm398, %v840, 0
        %v873 = vsel %vm398, %v842, 0
        %v875 = vsel %vm398, %v844, 0
        %v877 = vsel %vm398, %v846, 0
        %v879 = vsel %vm398, %v848, 0
        %v881 = vsel %vm398, %v850, 0
        %883 = vmatprep.subr.mxu0 0.0
        %884 = vmatpush1.xpose.msra.mxu0 0.0
        %885 = vmatprep.subr.mxu0 0.0
        %886 = vmatpush1.xpose.msra.mxu0 0.0
        %887 = vmatprep.subr.mxu0 0.0
        %888 = vmatpush1.xpose.msra.mxu0 0.0
        %889 = vmatprep.subr.mxu0 0.0
        %890 = vmatpush1.xpose.msra.mxu0 0.0
        %891 = vmatprep.subr.mxu0 0.0
        %892 = vmatpush1.xpose.msra.mxu0 0.0
        %893 = vmatprep.subr.mxu0 0.0
        %894 = vmatpush1.xpose.msra.mxu0 0.0
        %895 = vmatprep.subr.mxu0 0.0
        %896 = vmatpush1.xpose.msra.mxu0 0.0
        %897 = vmatprep.subr.mxu0 0.0
        %898 = vmatpush1.xpose.msra.mxu0 0.0
        %899 = vmatprep.subr.mxu0 0.0
        %900 = vmatpush1.xpose.msra.mxu0 %v881
        %901 = vmatprep.subr.mxu0 0.0
        %902 = vmatpush1.xpose.msra.mxu0 %v879
        %903 = vmatprep.subr.mxu0 0.0
        %904 = vmatpush1.xpose.msra.mxu0 %v877
        %905 = vmatprep.subr.mxu0 0.0
        %906 = vmatpush1.xpose.msra.mxu0 %v875
        %907 = vmatprep.subr.mxu0 0.0
        %908 = vmatpush1.xpose.msra.mxu0 %v873
        %909 = vmatprep.subr.mxu0 0.0
        %910 = vmatpush1.xpose.msra.mxu0 %v871
        %911 = vmatprep.subr.mxu0 0.0
        %912 = vmatpush1.xpose.msra.mxu0 %v869
        %913 = vmatprep.subr.mxu0 0.0
        %914 = vmatpush1.xpose.msra.mxu0 %v867
        %915 = vmatprep.subr.mxu0 0.0
        %916 = vmatpush2.xpose.msra.mxu0 0.0
        %917 = vmatprep.subr.mxu0 0.0
        %918 = vmatpush2.xpose.msra.mxu0 0.0
        %919 = vmatprep.subr.mxu0 0.0
        %920 = vmatpush2.xpose.msra.mxu0 0.0
        %921 = vmatprep.subr.mxu0 0.0
        %922 = vmatpush2.xpose.msra.mxu0 0.0
        %923 = vmatprep.subr.mxu0 0.0
        %924 = vmatpush2.xpose.msra.mxu0 0.0
        %925 = vmatprep.subr.mxu0 0.0
        %926 = vmatpush2.xpose.msra.mxu0 0.0
        %927 = vmatprep.subr.mxu0 0.0
        %928 = vmatpush2.xpose.msra.mxu0 0.0
        %929 = vmatprep.subr.mxu0 0.0
        %930 = vmatpush2.xpose.msra.mxu0 0.0
        %931 = vmatprep.subr.mxu0 0.0
        %932 = vmatpush2.xpose.msra.mxu0 0.0
        %933 = vmatprep.subr.mxu0 0.0
        %934 = vmatpush2.xpose.msra.mxu0 0.0
        %935 = vmatprep.subr.mxu0 0.0
        %936 = vmatpush2.xpose.msra.mxu0 0.0
        %937 = vmatprep.subr.mxu0 0.0
        %938 = vmatpush2.xpose.msra.mxu0 0.0
        %939 = vmatprep.subr.mxu0 0.0
        %940 = vmatpush2.xpose.msra.mxu0 0.0
        %941 = vmatprep.subr.mxu0 0.0
        %942 = vmatpush2.xpose.msra.mxu0 0.0
        %943 = vmatprep.subr.mxu0 0.0
        %944 = vmatpush2.xpose.msra.mxu0 0.0
        %945 = vmatprep.subr.mxu0 0.0
        %946 = vmatpush2.xpose.msra.mxu0 0.0
        %947 = vmatprep.mubr.f32.mxu0 0.0
        %948 = vmatmul.mubr.f32.gmra.mxu0 %v851
        %v949 = vpop.f32.mrf.mxu0
        %v950 = vadd.f32 0.0, %v949
        %v951 = vpop.f32.mrf.mxu0
        %952 = vmatprep.mubr.f32.mxu0 0.0
        %953 = vmatmul.mubr.f32.gmra.mxu0 %v853
        %v954 = vpop.f32.mrf.mxu0
        %v955 = vadd.f32 0.0, %v954
        %v956 = vpop.f32.mrf.mxu0
        %957 = vmatprep.mubr.f32.mxu0 0.0
        %958 = vmatmul.mubr.f32.gmra.mxu0 %v855
        %v959 = vpop.f32.mrf.mxu0
        %v960 = vadd.f32 0.0, %v959
        %v961 = vpop.f32.mrf.mxu0
        %962 = vmatprep.mubr.f32.mxu0 0.0
        %963 = vmatmul.mubr.f32.gmra.mxu0 %v857
        %v964 = vpop.f32.mrf.mxu0
        %v965 = vadd.f32 0.0, %v964
        %v966 = vpop.f32.mrf.mxu0
        %967 = vmatprep.mubr.f32.mxu0 0.0
        %968 = vmatmul.mubr.f32.gmra.mxu0 %v859
        %v969 = vpop.f32.mrf.mxu0
        %v970 = vadd.f32 0.0, %v969
        %v971 = vpop.f32.mrf.mxu0
        %972 = vmatprep.mubr.f32.mxu0 0.0
        %973 = vmatmul.mubr.f32.gmra.mxu0 %v861
        %v974 = vpop.f32.mrf.mxu0
        %v975 = vadd.f32 0.0, %v974
        %v976 = vpop.f32.mrf.mxu0
        %977 = vmatprep.mubr.f32.mxu0 0.0
        %978 = vmatmul.mubr.f32.gmra.mxu0 %v863
        %v979 = vpop.f32.mrf.mxu0
        %v980 = vadd.f32 0.0, %v979
        %v981 = vpop.f32.mrf.mxu0
        %982 = vmatprep.mubr.f32.mxu0 0.0
        %983 = vmatmul.mubr.f32.gmra.mxu0 %v865
        %v984 = vpop.f32.mrf.mxu0
        %v985 = vadd.f32 0.0, %v984
        %v986 = vpop.f32.mrf.mxu0
        %987 = vdwg.mxu0
        %v988 = vsel %vm536, %v950, -inf
        %989 = vmax.xlane.f32.xlu0 %v988
        %v990 = vpop.xlane.xlu0 %989
        %v991 = vsel %vm536, %v955, -inf
        %992 = vmax.xlane.f32.xlu0 %v991
        %v993 = vpop.xlane.xlu0 %992
        %v994 = vsel %vm536, %v960, -inf
        %995 = vmax.xlane.f32.xlu0 %v994
        %v996 = vpop.xlane.xlu0 %995
        %v997 = vsel %vm536, %v965, -inf
        %998 = vmax.xlane.f32.xlu0 %v997
        %v999 = vpop.xlane.xlu0 %998
        %v1000 = vsel %vm536, %v970, -inf
        %1001 = vmax.xlane.f32.xlu0 %v1000
        %v1002 = vpop.xlane.xlu0 %1001
        %v1003 = vsel %vm536, %v975, -inf
        %1004 = vmax.xlane.f32.xlu0 %v1003
        %v1005 = vpop.xlane.xlu0 %1004
        %v1006 = vsel %vm536, %v980, -inf
        %1007 = vmax.xlane.f32.xlu0 %v1006
        %v1008 = vpop.xlane.xlu0 %1007
        %v1009 = vsel %vm536, %v985, -inf
        %1010 = vmax.xlane.f32.xlu0 %v1009
        %v1011 = vpop.xlane.xlu0 %1010
        %v1012 = vsub.f32 %v950, %v990
        %v1013 = vsub.f32 %v955, %v993
        %v1014 = vsub.f32 %v960, %v996
        %v1015 = vsub.f32 %v965, %v999
        %v1016 = vsub.f32 %v970, %v1002
        %v1017 = vsub.f32 %v975, %v1005
        %v1018 = vsub.f32 %v980, %v1008
        %v1019 = vsub.f32 %v985, %v1011
        %v1020 = vmul.f32 %v1012, 1.442695
        %v1021 = vpow.pop %v1020
        %v1022 = vmul.f32 %v1013, 1.442695
        %v1023 = vpow.pop %v1022
        %v1024 = vmul.f32 %v1014, 1.442695
        %v1025 = vpow.pop %v1024
        %v1026 = vmul.f32 %v1015, 1.442695
        %v1027 = vpow.pop %v1026
        %v1028 = vmul.f32 %v1016, 1.442695
        %v1029 = vpow.pop %v1028
        %v1030 = vmul.f32 %v1017, 1.442695
        %v1031 = vpow.pop %v1030
        %v1032 = vmul.f32 %v1018, 1.442695
        %v1033 = vpow.pop %v1032
        %v1034 = vmul.f32 %v1019, 1.442695
        %v1035 = vpow.pop %v1034
        %v1036 = vsel %vm536, %v1021, 0.0
        %1037 = vadd.xlane.f32.xlu0 %v1036
        %v1038 = vpop.xlane.xlu0 %1037
        %v1039 = vsel %vm536, %v1023, 0.0
        %1040 = vadd.xlane.f32.xlu0 %v1039
        %v1041 = vpop.xlane.xlu0 %1040
        %v1042 = vsel %vm536, %v1025, 0.0
        %1043 = vadd.xlane.f32.xlu0 %v1042
        %v1044 = vpop.xlane.xlu0 %1043
        %v1045 = vsel %vm536, %v1027, 0.0
        %1046 = vadd.xlane.f32.xlu0 %v1045
        %v1047 = vpop.xlane.xlu0 %1046
        %v1048 = vsel %vm536, %v1029, 0.0
        %1049 = vadd.xlane.f32.xlu0 %v1048
        %v1050 = vpop.xlane.xlu0 %1049
        %v1051 = vsel %vm536, %v1031, 0.0
        %1052 = vadd.xlane.f32.xlu0 %v1051
        %v1053 = vpop.xlane.xlu0 %1052
        %v1054 = vsel %vm536, %v1033, 0.0
        %1055 = vadd.xlane.f32.xlu0 %v1054
        %v1056 = vpop.xlane.xlu0 %1055
        %v1057 = vsel %vm536, %v1035, 0.0
        %1058 = vadd.xlane.f32.xlu0 %v1057
        %v1059 = vpop.xlane.xlu0 %1058
        %v1060 = vrcp.pop %v1038
        %v1061 = vrcp.pop %v1041
        %v1062 = vrcp.pop %v1044
        %v1063 = vrcp.pop %v1047
        %v1064 = vrcp.pop %v1050
        %v1065 = vrcp.pop %v1053
        %v1066 = vrcp.pop %v1056
        %v1067 = vrcp.pop %v1059
        %v1068 = vmul.f32 %v1021, %v1060
        %v1069 = vmul.f32 %v1023, %v1061
        %v1070 = vmul.f32 %v1025, %v1062
        %v1071 = vmul.f32 %v1027, %v1063
        %v1072 = vmul.f32 %v1029, %v1064
        %v1073 = vmul.f32 %v1031, %v1065
        %v1074 = vmul.f32 %v1033, %v1066
        %v1075 = vmul.f32 %v1035, %v1067
        %v1077 = vsel %vm536, %v1068, 0
        %v1080 = vsel %vm536, %v1069, 0
        %v1083 = vsel %vm536, %v1070, 0
        %v1086 = vsel %vm536, %v1071, 0
        %v1089 = vsel %vm536, %v1072, 0
        %v1092 = vsel %vm536, %v1073, 0
        %v1095 = vsel %vm536, %v1074, 0
        %v1098 = vsel %vm536, %v1075, 0
        %1100 = vmatprep.subr.mxu0 0.0
        %1101 = vmatpush1.msra.mxu0 0.0
        %1102 = vmatprep.subr.mxu0 0.0
        %1103 = vmatpush1.msra.mxu0 0.0
        %1104 = vmatprep.subr.mxu0 0.0
        %1105 = vmatpush1.msra.mxu0 0.0
        %1106 = vmatprep.subr.mxu0 0.0
        %1107 = vmatpush1.msra.mxu0 0.0
        %1108 = vmatprep.subr.mxu0 0.0
        %1109 = vmatpush1.msra.mxu0 0.0
        %1110 = vmatprep.subr.mxu0 0.0
        %1111 = vmatpush1.msra.mxu0 0.0
        %1112 = vmatprep.subr.mxu0 0.0
        %1113 = vmatpush1.msra.mxu0 0.0
        %1114 = vmatprep.subr.mxu0 0.0
        %1115 = vmatpush1.msra.mxu0 0.0
        %1116 = vmatprep.subr.mxu0 0.0
        %1117 = vmatpush1.msra.mxu0 %v372
        %1118 = vmatprep.subr.mxu0 0.0
        %1119 = vmatpush1.msra.mxu0 %v368
        %1120 = vmatprep.subr.mxu0 0.0
        %1121 = vmatpush1.msra.mxu0 %v362
        %1122 = vmatprep.subr.mxu0 0.0
        %1123 = vmatpush1.msra.mxu0 %v358
        %1124 = vmatprep.subr.mxu0 0.0
        %1125 = vmatpush1.msra.mxu0 %v352
        %1126 = vmatprep.subr.mxu0 0.0
        %1127 = vmatpush1.msra.mxu0 %v348
        %1128 = vmatprep.subr.mxu0 0.0
        %1129 = vmatpush1.msra.mxu0 %v342
        %1130 = vmatprep.subr.mxu0 0.0
        %1131 = vmatpush1.msra.mxu0 %v338
        %1132 = vmatprep.subr.mxu0 0.0
        %1133 = vmatpush2.msra.mxu0 0.0
        %1134 = vmatprep.subr.mxu0 0.0
        %1135 = vmatpush2.msra.mxu0 0.0
        %1136 = vmatprep.subr.mxu0 0.0
        %1137 = vmatpush2.msra.mxu0 0.0
        %1138 = vmatprep.subr.mxu0 0.0
        %1139 = vmatpush2.msra.mxu0 0.0
        %1140 = vmatprep.subr.mxu0 0.0
        %1141 = vmatpush2.msra.mxu0 0.0
        %1142 = vmatprep.subr.mxu0 0.0
        %1143 = vmatpush2.msra.mxu0 0.0
        %1144 = vmatprep.subr.mxu0 0.0
        %1145 = vmatpush2.msra.mxu0 0.0
        %1146 = vmatprep.subr.mxu0 0.0
        %1147 = vmatpush2.msra.mxu0 0.0
        %1148 = vmatprep.subr.mxu0 0.0
        %1149 = vmatpush2.msra.mxu0 0.0
        %1150 = vmatprep.subr.mxu0 0.0
        %1151 = vmatpush2.msra.mxu0 0.0
        %1152 = vmatprep.subr.mxu0 0.0
        %1153 = vmatpush2.msra.mxu0 0.0
        %1154 = vmatprep.subr.mxu0 0.0
        %1155 = vmatpush2.msra.mxu0 0.0
        %1156 = vmatprep.subr.mxu0 0.0
        %1157 = vmatpush2.msra.mxu0 0.0
        %1158 = vmatprep.subr.mxu0 0.0
        %1159 = vmatpush2.msra.mxu0 0.0
        %1160 = vmatprep.subr.mxu0 0.0
        %1161 = vmatpush2.msra.mxu0 0.0
        %1162 = vmatprep.subr.mxu0 0.0
        %1163 = vmatpush2.msra.mxu0 0.0
        %1164 = vmatprep.mubr.f32.mxu0 0.0
        %1165 = vmatmul.mubr.f32.gmra.mxu0 %v1077
        %v1166 = vpop.f32.mrf.mxu0
        %v1167 = vadd.f32 0.0, %v1166
        %v1168 = vpop.f32.mrf.mxu0
        %1169 = vmatprep.mubr.f32.mxu0 0.0
        %1170 = vmatmul.mubr.f32.gmra.mxu0 %v1080
        %v1171 = vpop.f32.mrf.mxu0
        %v1172 = vadd.f32 0.0, %v1171
        %v1173 = vpop.f32.mrf.mxu0
        %1174 = vmatprep.mubr.f32.mxu0 0.0
        %1175 = vmatmul.mubr.f32.gmra.mxu0 %v1083
        %v1176 = vpop.f32.mrf.mxu0
        %v1177 = vadd.f32 0.0, %v1176
        %v1178 = vpop.f32.mrf.mxu0
        %1179 = vmatprep.mubr.f32.mxu0 0.0
        %1180 = vmatmul.mubr.f32.gmra.mxu0 %v1086
        %v1181 = vpop.f32.mrf.mxu0
        %v1182 = vadd.f32 0.0, %v1181
        %v1183 = vpop.f32.mrf.mxu0
        %1184 = vmatprep.mubr.f32.mxu0 0.0
        %1185 = vmatmul.mubr.f32.gmra.mxu0 %v1089
        %v1186 = vpop.f32.mrf.mxu0
        %v1187 = vadd.f32 0.0, %v1186
        %v1188 = vpop.f32.mrf.mxu0
        %1189 = vmatprep.mubr.f32.mxu0 0.0
        %1190 = vmatmul.mubr.f32.gmra.mxu0 %v1092
        %v1191 = vpop.f32.mrf.mxu0
        %v1192 = vadd.f32 0.0, %v1191
        %v1193 = vpop.f32.mrf.mxu0
        %1194 = vmatprep.mubr.f32.mxu0 0.0
        %1195 = vmatmul.mubr.f32.gmra.mxu0 %v1095
        %v1196 = vpop.f32.mrf.mxu0
        %v1197 = vadd.f32 0.0, %v1196
        %v1198 = vpop.f32.mrf.mxu0
        %1199 = vmatprep.mubr.f32.mxu0 0.0
        %1200 = vmatmul.mubr.f32.gmra.mxu0 %v1098
        %v1201 = vpop.f32.mrf.mxu0
        %v1202 = vadd.f32 0.0, %v1201
        %v1203 = vpop.f32.mrf.mxu0
        %1204 = vdwg.mxu0
        %v1205 = vpack.c.bf16 %v1172, %v1167
        %v1206 = vpack.c.bf16 %v1182, %v1177
        %v1207 = vpack.c.bf16 %v1192, %v1187
        %v1208 = vpack.c.bf16 %v1202, %v1197
        %v1213 = vunpack.c.l.b16 %v1205
        %v1214 = vunpack.c.h.b16 %v1205
        %v1215 = vunpack.c.l.b16 %v1206
        %v1216 = vunpack.c.h.b16 %v1206
        %v1217 = vunpack.c.l.b16 %v1207
        %v1218 = vunpack.c.h.b16 %v1207
        %v1219 = vunpack.c.l.b16 %v1208
        %v1220 = vunpack.c.h.b16 %v1208
        %v1221 = vpack.c.b16 %v1213, %v1213
        %v1222 = vpack.c.b16 %v1214, %v1214
        %v1223 = vpack.c.b16 %v1215, %v1215
        %v1224 = vpack.c.b16 %v1216, %v1216
        %v1225 = vpack.c.b16 %v1217, %v1217
        %v1226 = vpack.c.b16 %v1218, %v1218
        %v1227 = vpack.c.b16 %v1219, %v1219
        %v1228 = vpack.c.b16 %v1220, %v1220
        %1229 = vrot.lane.b32.xlu0 %v1221, 64
        %v1230 = vpop.permute.xlu0 %1229
        %1231 = vrot.lane.b32.xlu0 %v1222, 64
        %v1232 = vpop.permute.xlu0 %1231
        %1233 = vrot.lane.b32.xlu0 %v1223, 64
        %v1234 = vpop.permute.xlu0 %1233
        %1235 = vrot.lane.b32.xlu0 %v1224, 64
        %v1236 = vpop.permute.xlu0 %1235
        %1237 = vrot.lane.b32.xlu0 %v1225, 64
        %v1238 = vpop.permute.xlu0 %1237
        %1239 = vrot.lane.b32.xlu0 %v1226, 64
        %v1240 = vpop.permute.xlu0 %1239
        %1241 = vrot.lane.b32.xlu0 %v1227, 64
        %v1242 = vpop.permute.xlu0 %1241
        %1243 = vrot.lane.b32.xlu0 %v1228, 64
        %v1244 = vpop.permute.xlu0 %1243
        %vm1253 = vcmask 1043968
        %1254 = vst.msk [vmem:[#allocation2] sm:$0xf] %vm1253, %v1230
        %1255 = vst.msk [vmem:[#allocation2 + $0x4] sm:$0xf] %vm1253, %v1232
        %1256 = vst.msk [vmem:[#allocation2 + $0x8] sm:$0xf] %vm1253, %v1234
        %1257 = vst.msk [vmem:[#allocation2 + $0xc] sm:$0xf] %vm1253, %v1236
        %1258 = vst.msk [vmem:[#allocation2 + $0x10] sm:$0xf] %vm1253, %v1238
        %1259 = vst.msk [vmem:[#allocation2 + $0x14] sm:$0xf] %vm1253, %v1240
        %1260 = vst.msk [vmem:[#allocation2 + $0x18] sm:$0xf] %vm1253, %v1242
        %1261 = vst.msk [vmem:[#allocation2 + $0x1c] sm:$0xf] %vm1253, %v1244
        %v1262 = vld [vmem:[#allocation2] sm:$0xf]
        %v1263 = vld [vmem:[#allocation2 + $0x4] sm:$0xf]
        %v1264 = vld [vmem:[#allocation2 + $0x8] sm:$0xf]
        %v1265 = vld [vmem:[#allocation2 + $0xc] sm:$0xf]
        %v1266 = vld [vmem:[#allocation2 + $0x10] sm:$0xf]
        %v1267 = vld [vmem:[#allocation2 + $0x14] sm:$0xf]
        %v1268 = vld [vmem:[#allocation2 + $0x18] sm:$0xf]
        %v1269 = vld [vmem:[#allocation2 + $0x1c] sm:$0xf]
        %v1270 = vld [vmem:[%s3] sm:$0xf]
        %v1271 = vld [vmem:[%s3 + $0x4] sm:$0xf]
        %v1272 = vld [vmem:[%s3 + $0x8] sm:$0xf]
        %v1273 = vld [vmem:[%s3 + $0xc] sm:$0xf]
        %v1274 = vld [vmem:[%s3 + $0x10] sm:$0xf]
        %v1275 = vld [vmem:[%s3 + $0x14] sm:$0xf]
        %v1276 = vld [vmem:[%s3 + $0x18] sm:$0xf]
        %v1277 = vld [vmem:[%s3 + $0x1c] sm:$0xf]
        %v1278 = vld [vmem:[%s3 + $0x20] sm:$0xf]
        %v1279 = vld [vmem:[%s3 + $0x24] sm:$0xf]
        %v1280 = vld [vmem:[%s3 + $0x28] sm:$0xf]
        %v1281 = vld [vmem:[%s3 + $0x2c] sm:$0xf]
        %v1282 = vld [vmem:[%s3 + $0x30] sm:$0xf]
        %v1283 = vld [vmem:[%s3 + $0x34] sm:$0xf]
        %v1284 = vld [vmem:[%s3 + $0x38] sm:$0xf]
        %v1285 = vld [vmem:[%s3 + $0x3c] sm:$0xf]
        %v1286 = vld [vmem:[%s4] sm:$0x1]
        %v1288 = vlaneseq
        %v1289 = vshrl.u32 %v1288, 7
        %v1290 = vsub.s32 0, %v1289
        %v1291 = vrot.slane %v1286, %v1290
        %v1301 = vunpack.c.l.b16 %v1262
        %v1302 = vunpack.c.l.b16 %v1263
        %v1303 = vunpack.c.l.b16 %v1264
        %v1304 = vunpack.c.l.b16 %v1265
        %v1305 = vunpack.c.l.b16 %v1266
        %v1306 = vunpack.c.l.b16 %v1267
        %v1307 = vunpack.c.l.b16 %v1268
        %v1308 = vunpack.c.l.b16 %v1269
        %v1309 = vpack.c.b16 %v1302, %v1301
        %v1310 = vpack.c.b16 %v1304, %v1303
        %v1311 = vpack.c.b16 %v1306, %v1305
        %v1312 = vpack.c.b16 %v1308, %v1307
        %v1333 = vunpack.c.l.b16 %v1270
        %v1334 = vunpack.c.l.b16 %v1271
        %v1335 = vunpack.c.l.b16 %v1272
        %v1336 = vunpack.c.l.b16 %v1273
        %v1337 = vunpack.c.l.b16 %v1274
        %v1338 = vunpack.c.l.b16 %v1275
        %v1339 = vunpack.c.l.b16 %v1276
        %v1340 = vunpack.c.l.b16 %v1277
        %v1341 = vunpack.c.l.b16 %v1278
        %v1342 = vunpack.c.l.b16 %v1279
        %v1343 = vunpack.c.l.b16 %v1280
        %v1344 = vunpack.c.l.b16 %v1281
        %v1345 = vunpack.c.l.b16 %v1282
        %v1346 = vunpack.c.l.b16 %v1283
        %v1347 = vunpack.c.l.b16 %v1284
        %v1348 = vunpack.c.l.b16 %v1285
        %v1349 = vpack.c.b16 %v1334, %v1333
        %v1350 = vpack.c.b16 %v1336, %v1335
        %v1351 = vpack.c.b16 %v1338, %v1337
        %v1352 = vpack.c.b16 %v1340, %v1339
        %v1353 = vpack.c.b16 %v1342, %v1341
        %v1354 = vpack.c.b16 %v1344, %v1343
        %v1355 = vpack.c.b16 %v1346, %v1345
        %v1356 = vpack.c.b16 %v1348, %v1347
        %1365 = vmatprep.subr.bf16.mxu0 0
        %1366 = vmatpush1.bf16.msra.mxu0 %v1356
        %1367 = vmatprep.subr.bf16.mxu0 0
        %1368 = vmatpush1.bf16.msra.mxu0 %v1355
        %1369 = vmatprep.subr.bf16.mxu0 0
        %1370 = vmatpush1.bf16.msra.mxu0 %v1354
        %1371 = vmatprep.subr.bf16.mxu0 0
        %1372 = vmatpush1.bf16.msra.mxu0 %v1353
        %1373 = vmatprep.subr.bf16.mxu0 0
        %1374 = vmatpush1.bf16.msra.mxu0 %v1352
        %1375 = vmatprep.subr.bf16.mxu0 0
        %1376 = vmatpush1.bf16.msra.mxu0 %v1351
        %1377 = vmatprep.subr.bf16.mxu0 0
        %1378 = vmatpush1.bf16.msra.mxu0 %v1350
        %1379 = vmatprep.subr.bf16.mxu0 0
        %1380 = vmatpush1.bf16.msra.mxu0 %v1349
        %1381 = vmatprep.subr.bf16.mxu0 0
        %1382 = vmatpush2.bf16.msra.mxu0 0
        %1383 = vmatprep.subr.bf16.mxu0 0
        %1384 = vmatpush2.bf16.msra.mxu0 0
        %1385 = vmatprep.subr.bf16.mxu0 0
        %1386 = vmatpush2.bf16.msra.mxu0 0
        %1387 = vmatprep.subr.bf16.mxu0 0
        %1388 = vmatpush2.bf16.msra.mxu0 0
        %1389 = vmatprep.subr.bf16.mxu0 0
        %1390 = vmatpush2.bf16.msra.mxu0 0
        %1391 = vmatprep.subr.bf16.mxu0 0
        %1392 = vmatpush2.bf16.msra.mxu0 0
        %1393 = vmatprep.subr.bf16.mxu0 0
        %1394 = vmatpush2.bf16.msra.mxu0 0
        %1395 = vmatprep.subr.bf16.mxu0 0
        %1396 = vmatpush2.bf16.msra.mxu0 0
        %1397 = vmatprep.mubr.bf16.mxu0 0
        %1398 = vmatmul.mubr.bf16.gmra.mxu0 %v1309
        %v1399 = vpop.f32.mrf.mxu0
        %v1400 = vadd.f32 %v1291, %v1399
        %v1401 = vpop.f32.mrf.mxu0
        %v1402 = vpop.f32.mrf.mxu0
        %v1403 = vadd.f32 %v1291, %v1402
        %v1404 = vpop.f32.mrf.mxu0
        %1405 = vmatprep.mubr.bf16.mxu0 0
        %1406 = vmatmul.mubr.bf16.gmra.mxu0 %v1310
        %v1407 = vpop.f32.mrf.mxu0
        %v1408 = vadd.f32 %v1291, %v1407
        %v1409 = vpop.f32.mrf.mxu0
        %v1410 = vpop.f32.mrf.mxu0
        %v1411 = vadd.f32 %v1291, %v1410
        %v1412 = vpop.f32.mrf.mxu0
        %1413 = vmatprep.mubr.bf16.mxu0 0
        %1414 = vmatmul.mubr.bf16.gmra.mxu0 %v1311
        %v1415 = vpop.f32.mrf.mxu0
        %v1416 = vadd.f32 %v1291, %v1415
        %v1417 = vpop.f32.mrf.mxu0
        %v1418 = vpop.f32.mrf.mxu0
        %v1419 = vadd.f32 %v1291, %v1418
        %v1420 = vpop.f32.mrf.mxu0
        %1421 = vmatprep.mubr.bf16.mxu0 0
        %1422 = vmatmul.mubr.bf16.gmra.mxu0 %v1312
        %v1423 = vpop.f32.mrf.mxu0
        %v1424 = vadd.f32 %v1291, %v1423
        %v1425 = vpop.f32.mrf.mxu0
        %v1426 = vpop.f32.mrf.mxu0
        %v1427 = vadd.f32 %v1291, %v1426
        %v1428 = vpop.f32.mrf.mxu0
        %1429 = vdwg.mxu0
        %v1430 = vpack.c.bf16 %v1403, %v1400
        %v1431 = vpack.c.bf16 %v1411, %v1408
        %v1432 = vpack.c.bf16 %v1419, %v1416
        %v1433 = vpack.c.bf16 %v1427, %v1424
        %v1438 = vunpack.c.l.b16 %v1430
        %v1439 = vunpack.c.h.b16 %v1430
        %v1440 = vunpack.c.l.b16 %v1431
        %v1441 = vunpack.c.h.b16 %v1431
        %v1442 = vunpack.c.l.b16 %v1432
        %v1443 = vunpack.c.h.b16 %v1432
        %v1444 = vunpack.c.l.b16 %v1433
        %v1445 = vunpack.c.h.b16 %v1433
        %v1446 = vpack.c.b16 %v1438, %v1438
        %v1447 = vpack.c.b16 %v1439, %v1439
        %v1448 = vpack.c.b16 %v1440, %v1440
        %v1449 = vpack.c.b16 %v1441, %v1441
        %v1450 = vpack.c.b16 %v1442, %v1442
        %v1451 = vpack.c.b16 %v1443, %v1443
        %v1452 = vpack.c.b16 %v1444, %v1444
        %v1453 = vpack.c.b16 %v1445, %v1445
        %1462 = vst [vmem:[%s217] sm:$0xf] %v1446
        %1463 = vst [vmem:[%s217 + $0x4] sm:$0xf] %v1447
        %1464 = vst [vmem:[%s217 + $0x8] sm:$0xf] %v1448
        %1465 = vst [vmem:[%s217 + $0xc] sm:$0xf] %v1449
        %1466 = vst [vmem:[%s217 + $0x10] sm:$0xf] %v1450
        %1467 = vst [vmem:[%s217 + $0x14] sm:$0xf] %v1451
        %1468 = vst [vmem:[%s217 + $0x18] sm:$0xf] %v1452
        %1469 = vst [vmem:[%s217 + $0x1c] sm:$0xf] %v1453
        %s1470 = sand.u32 %s137, 1
        %s1471 = scalar_lea.sflag [#allocation4], %s1470
        %s1472 = sand.u32 %s137, 1
        %s1473 = smul.addr %s1472, 32
        %s1474 = scalar_lea.vmem [#allocation3], %s1473
        // Predicated region
        $region41: #{tpu_custom_call.1} parent=39 // pred_check
          %p1475 = pneg %p147
        $region42: #{tpu_custom_call.1} parent=39 // pred_check_branch
          %1477 = sbr.rel (%p1475) target = $region44
        $region43: #{tpu_custom_call.1} parent=39 // pred_region
          %s1479 = ssub.s32 512, 512
          %1480 = vsyncadd %s1471, %s1479
          %s1481 = smul.addr %s19, 8
          %s1482 = smul.addr %s1481, 64
          %s1483 = scalar_lea.hbm %s5, %s1482
          %s1484 = sshll.u32 %s1474, 4
          %s1485 = int_to_ptr.vmem [resolvable:$true] %s1484
          %1490 = dma.vmem_to_hbm [thread:$0]  %s1485, 512, %s1483, %s1471, 64, 64, 4
        $region44: #{tpu_custom_call.1} parent=39 // pred_fallthru
          _
      $region40: #{tpu_custom_call.1} parent=5 // pred_fallthru
        _
      %p1491 = scmp.le.s32.totalorder 2, %s14
      // Predicated region
      $region45: #{tpu_custom_call.1} parent=5 // pred_check
        %p1492 = pneg %p1491
      $region46: #{tpu_custom_call.1} parent=5 // pred_check_branch
        %1494 = sbr.rel (%p1492) target = $region48
      $region47: #{tpu_custom_call.1} parent=5 // pred_region
        %s1495 = ssub.s32 %s14, 2
        // Predicated region
        $region49: #{tpu_custom_call.1} parent=47 // pred_check
          %p1496 = pneg %p153
        $region50: #{tpu_custom_call.1} parent=47 // pred_check_branch
          %1498 = sbr.rel (%p1496) target = $region52
        $region51: #{tpu_custom_call.1} parent=47 // pred_region
          %s1499 = sand.u32 %s138, 1
          %s1500 = scalar_lea.sflag [#allocation4], %s1499
          %s1501 = sand.u32 %s138, 1
          %s1502 = smul.addr %s1501, 32
          %s1503 = scalar_lea.vmem [#allocation3], %s1502
          %1504 = dma.done %s1500, 512
        $region52: #{tpu_custom_call.1} parent=47 // pred_fallthru
          _
      $region48: #{tpu_custom_call.1} parent=5 // pred_fallthru
        _
    $region6: #{tpu_custom_call.1} parent=1 // loop_footer
      %s18 = sadd.s32 1, %s14
    $region7: #{tpu_custom_call.1} parent=1 // loop_footer_branch
      %13 = sbr.rel target = $region3
    $region8: #{tpu_custom_call.1} parent=1 // loop_exit
      _
    %1505 = vsyncpa [#allocation4], 1
    %s1506 = scalar_lea.sflag [#allocation4], 1
    %1507 = vsyncpa %s1506, 1

</llo_original>
